<compile_context>
chip_gen: v7x
topology: tpu7x:2x2x1
jax: 0.10.0
libtpu: 0.0.40
codegen_flags: <defaults>
</compile_context>

<pallas_src>
import jax
import jax.numpy as jnp
from jax.experimental import pallas as pl
from jax.experimental.pallas import tpu as pltpu

EPS = 1e-5  # nn.BatchNorm2d default eps


def conv_stats_kernel(xp_ref, w_ref, b_ref, y_ref, stats_ref):
    """One (image, row-tile) step: 3x3 conv as 9 accumulated GEMM taps + bias + ReLU,
    plus per-channel sum / sum-of-squares accumulation for the BatchNorm pass.

    xp_ref:    (H+2, W+2, Cin)   bf16 zero-padded NHWC image (resident across row tiles)
    w_ref:     (3, 3, Cin, Cout) bf16 conv weights (resident)
    b_ref:     (1, Cout)         f32 conv bias
    y_ref:     (TR, W, Cout)     f32 conv+ReLU output rows for this tile
    stats_ref: (1, 2, Cout)      f32 resident accumulator: row 0 = sum, row 1 = sum sq
    """
    tr, w_len, cout = y_ref.shape
    cin = xp_ref.shape[-1]
    row0 = pl.program_id(1) * tr                    # top padded-input row of this tile

    w_all = w_ref[...]                              # (3, 3, Cin, Cout), tiny
    acc = jnp.zeros((tr * w_len, cout), jnp.float32)
    for kh in range(3):
        # Rows [row0+kh, row0+kh+TR) of the padded image; dynamic start on the leading
        # (untiled) dim only, column shifts below are static slices of loaded values.
        xh = xp_ref[pl.ds(row0 + kh, tr), :, :]     # (TR, W+2, Cin)
        for kw in range(3):
            tap = xh[:, kw:kw + w_len, :].reshape(tr * w_len, cin)
            acc += jnp.dot(tap, w_all[kh, kw],
                           preferred_element_type=jnp.float32)

    y = jnp.maximum(acc + b_ref[...], 0.0)          # conv bias + ReLU (f32)
    y_ref[...] = y.reshape(tr, w_len, cout)

    @pl.when(pl.program_id(1) == 0)                 # first row tile of this image
    def _init():
        stats_ref[...] = jnp.zeros_like(stats_ref)

    s = jnp.sum(y, axis=0, keepdims=True)           # (1, Cout)
    ss = jnp.sum(y * y, axis=0, keepdims=True)      # (1, Cout)
    stats_ref[...] += jnp.concatenate([s, ss], axis=0)[None]


def bn_pool_kernel(y_ref, scale_ref, shift_ref, o_ref):
    """Fused BatchNorm normalize + MaxPool2d(2) on a slab of 2*TR image rows.

    y_ref:     (2*TR, OW, 2, Cout)  conv+ReLU output (W split as OW x 2, free reshape)
    scale_ref: (1, Cout)            inv_std (gamma = 1)
    shift_ref: (1, Cout)            -mean * inv_std (beta = 0)
    o_ref:     (TR, OW, Cout)       pooled, normalized output rows
    """
    tr, ow, c = o_ref.shape
    y = y_ref[...] * scale_ref[...] + shift_ref[...]               # BatchNorm (train mode)
    wmax = jnp.maximum(y[:, :, 0, :], y[:, :, 1, :])               # pool over the W pair
    wmax = wmax.reshape(tr, 2, ow, c)                              # split adjacent H rows
    o_ref[...] = jnp.maximum(wmax[:, 0, :, :], wmax[:, 1, :, :])   # pool over the H pair


def _largest_tile(total, cap, multiple):
    """Largest divisor of `total` that is <= cap and a multiple of `multiple`."""
    assert total % multiple == 0 and total >= multiple
    t = max(multiple, min(cap, total) - (min(cap, total) % multiple))
    while total % t:
        t -= multiple
    return t


def conv_pool_block(x, weight, bias, *, tile_rows=None, pool_tile_rows=None,
                    matmul_dtype=jnp.bfloat16):
    """x: (N, Cin, H, W) f32; weight: (Cout, Cin, 3, 3); bias: (Cout,).
    Returns NCHW (N, Cout, H//2, W//2)."""
    N, Cin, H, W = x.shape
    Cout, _, KH, KW = weight.shape
    assert (KH, KW) == (3, 3)
    assert H % 2 == 0 and W % 2 == 0
    OH, OW = H // 2, W // 2

    # ---- glue: NCHW -> zero-padded NHWC slab (halo rows/cols for the 3x3 taps).
    # This is the only HBM copy of the input (no 9x im2col materialization).
    xp = jnp.pad(jnp.transpose(x, (0, 2, 3, 1)),
                 ((0, 0), (1, 1), (1, 1), (0, 0))).astype(matmul_dtype)   # (N, H+2, W+2, Cin)
    w4 = jnp.transpose(weight, (2, 3, 1, 0)).astype(matmul_dtype)         # (KH, KW, Cin, Cout)
    b_row = bias.reshape(1, Cout).astype(jnp.float32)

    # ---- pass 1: row-tiled conv + bias + ReLU + per-image channel sum / sumsq ----
    if tile_rows is None:
        tile_rows = max(1, 4096 // W)               # keep GEMM M per tile around <=4096 rows
    tr = _largest_tile(H, tile_rows, 1)
    n_row_tiles = H // tr
    # TODO(synk): for very large feature maps (padded image block too big for VMEM),
    # switch the input to memory_space=pl.ANY + manual halo DMA per row tile.

    y, stats = pl.pallas_call(
        conv_stats_kernel,
        grid=(N, n_row_tiles),
        in_specs=[
            pl.BlockSpec((None, H + 2, W + 2, Cin), lambda n, r: (n, 0, 0, 0)),
            pl.BlockSpec((KH, KW, Cin, Cout), lambda n, r: (0, 0, 0, 0)),
            pl.BlockSpec((1, Cout), lambda n, r: (0, 0)),
        ],
        out_specs=[
            pl.BlockSpec((None, tr, W, Cout), lambda n, r: (n, r, 0, 0)),
            pl.BlockSpec((1, 2, Cout), lambda n, r: (n, 0, 0)),
        ],
        out_shape=[
            jax.ShapeDtypeStruct((N, H, W, Cout), jnp.float32),
            jax.ShapeDtypeStruct((N, 2, Cout), jnp.float32),
        ],
        compiler_params=pltpu.CompilerParams(
            dimension_semantics=("parallel", "arbitrary")),
    )(xp, w4, b_row)

    # ---- tiny glue: combine per-image stats into BN scale/shift (gamma=1, beta=0) ----
    tot = jnp.sum(stats, axis=0)                              # (2, Cout)
    m_count = N * H * W
    mean = tot[0] / m_count
    var = jnp.maximum(tot[1] / m_count - mean * mean, 0.0)    # biased (training-mode) var
    inv_std = jax.lax.rsqrt(var + EPS)
    scale = inv_std.reshape(1, Cout)
    shift = (-mean * inv_std).reshape(1, Cout)

    # ---- pass 2: fused BatchNorm normalize + MaxPool2d(2) ----
    # Free (bitcast) reshape: (N, H, W, Cout) == (N, H, OW, 2, Cout).
    y5 = y.reshape(N, H, OW, 2, Cout)
    if pool_tile_rows is None:
        pool_tile_rows = max(1, (4 << 20) // (2 * OW * 2 * Cout * 4))   # stay well under VMEM
    tr2 = _largest_tile(OH, pool_tile_rows, 1)

    pooled = pl.pallas_call(
        bn_pool_kernel,
        grid=(N, OH // tr2),
        in_specs=[
            pl.BlockSpec((None, 2 * tr2, OW, 2, Cout), lambda n, r: (n, r, 0, 0, 0)),
            pl.BlockSpec((1, Cout), lambda n, r: (0, 0)),
            pl.BlockSpec((1, Cout), lambda n, r: (0, 0)),
        ],
        out_specs=pl.BlockSpec((None, tr2, OW, Cout), lambda n, r: (n, r, 0, 0)),
        out_shape=jax.ShapeDtypeStruct((N, OH, OW, Cout), jnp.float32),
        compiler_params=pltpu.CompilerParams(
            dimension_semantics=("parallel", "parallel")),
    )(y5, scale, shift)

    # TODO(synk): emit NCHW directly from pass 2 (in-kernel transpose) to avoid this
    # final XLA transpose when the pooled map is large.
    return jnp.transpose(pooled, (0, 3, 1, 2))   # NHWC -> NCHW


def reference(x, weight, bias):
    """Pure-JAX reference mirroring the PyTorch forward (training-mode BatchNorm)."""
    y = jax.lax.conv_general_dilated(
        x, weight, window_strides=(1, 1), padding=((1, 1), (1, 1)),
        dimension_numbers=("NCHW", "OIHW", "NCHW"))
    y = y + bias[None, :, None, None]
    y = jnp.maximum(y, 0.0)
    mean = jnp.mean(y, axis=(0, 2, 3), keepdims=True)
    var = jnp.mean((y - mean) ** 2, axis=(0, 2, 3), keepdims=True)
    y = (y - mean) * jax.lax.rsqrt(var + EPS)
    y = jax.lax.reduce_window(y, -jnp.inf, jax.lax.max, (1, 1, 2, 2), (1, 1, 2, 2), "VALID")
    return y


if __name__ == "__main__":
    N, Cin, H, W = 2, 4, 16, 16
    Cout = 8

    key = jax.random.PRNGKey(0)
    k_w, k_b, k_x = jax.random.split(key, 3)
    fan_in = Cin * 3 * 3
    bound = float(1.0 / (fan_in ** 0.5))        # PyTorch Conv2d default init range
    weight = jax.random.uniform(k_w, (Cout, Cin, 3, 3), jnp.float32, -bound, bound)
    bias = jax.random.uniform(k_b, (Cout,), jnp.float32, -bound, bound)
    x = jax.random.normal(k_x, (N, Cin, H, W), dtype=jnp.float32)

    # tile_rows=8 / pool_tile_rows=4 so this small test shape still exercises multi-tile
    # stats accumulation, the resident-input reuse across row tiles, and pooled row tiling;
    # real shapes use the larger defaults.
    out = jax.block_until_ready(
        conv_pool_block(x, weight, bias, tile_rows=8, pool_tile_rows=4))
    ref = jax.block_until_ready(reference(x, weight, bias))

    err = float(jnp.max(jnp.abs(out - ref)))
    assert out.shape == (N, Cout, H // 2, W // 2), out.shape
    assert err < 5e-2, f"max abs error vs reference too large: {err}"

    print("KERNEL_OK")
</pallas_src>

<mosaic_0001>
module attributes {stable_mosaic.version = 11 : i64} {
  func.func @conv_stats_kernel(%arg0: i32, %arg1: i32, %arg2: memref<1x18x18x4xbf16, #tpu.memory_space<vmem>>, %arg3: memref<3x3x4x8xbf16, #tpu.memory_space<vmem>>, %arg4: memref<1x8xf32, #tpu.memory_space<vmem>>, %arg5: memref<1x8x16x8xf32, #tpu.memory_space<vmem>>, %arg6: memref<1x2x8xf32, #tpu.memory_space<vmem>>) attributes {dimension_semantics = [#tpu.dimension_semantics<parallel>, #tpu.dimension_semantics<arbitrary>], iteration_bounds = array<i64: 2, 2>, scalar_prefetch = 0 : i64, scratch_operands = 0 : i64, tpu.core_type = #tpu.core_type<tc>, window_params = [{transform_indices = @transform_0, window_bounds = array<i64: 1, 18, 18, 4>}, {pipeline_mode = #tpu.pipeline_mode<synchronous>, transform_indices = @transform_1, window_bounds = array<i64: 3, 3, 4, 8>}, {pipeline_mode = #tpu.pipeline_mode<synchronous>, transform_indices = @transform_2, window_bounds = array<i64: 1, 8>}, {transform_indices = @transform_3, window_bounds = array<i64: 1, 8, 16, 8>}, {transform_indices = @transform_4, window_bounds = array<i64: 1, 2, 8>}]} {
    %c8_i32 = arith.constant 8 : i32
    %0 = arith.muli %arg1, %c8_i32 : i32
    %c0 = arith.constant 0 : index
    %c0_0 = arith.constant 0 : index
    %c0_1 = arith.constant 0 : index
    %c0_2 = arith.constant 0 : index
    %1 = vector.load %arg3[%c0, %c0_0, %c0_1, %c0_2] : memref<3x3x4x8xbf16, #tpu.memory_space<vmem>>, vector<3x3x4x8xbf16>
    %cst = arith.constant 0.000000e+00 : f32
    %2 = vector.broadcast %cst : f32 to vector<128x8xf32>
    %c0_i32 = arith.constant 0 : i32
    %3 = arith.addi %0, %c0_i32 : i32
    %c0_3 = arith.constant 0 : index
    %4 = arith.index_cast %3 : i32 to index
    %c0_4 = arith.constant 0 : index
    %c0_5 = arith.constant 0 : index
    %5 = vector.load %arg2[%c0_3, %4, %c0_4, %c0_5] : memref<1x18x18x4xbf16, #tpu.memory_space<vmem>>, vector<1x8x18x4xbf16>
    %6 = vector.shape_cast %5 : vector<1x8x18x4xbf16> to vector<8x18x4xbf16>
    %7 = vector.extract_strided_slice %6 {offsets = [0, 0, 0], sizes = [8, 16, 4], strides = [1, 1, 1]} : vector<8x18x4xbf16> to vector<8x16x4xbf16>
    %8 = vector.shape_cast %7 : vector<8x16x4xbf16> to vector<128x4xbf16>
    %9 = vector.extract_strided_slice %1 {offsets = [0, 0, 0, 0], sizes = [1, 1, 4, 8], strides = [1, 1, 1, 1]} : vector<3x3x4x8xbf16> to vector<1x1x4x8xbf16>
    %10 = vector.shape_cast %9 : vector<1x1x4x8xbf16> to vector<4x8xbf16>
    %cst_6 = arith.constant dense<0.000000e+00> : vector<128x8xf32>
    %11 = tpu.matmul %8, %10, %cst_6 {dimension_numbers = #tpu.dot_dimension_numbers<[1], [0], [0], [1], [0, 0, 1, 1], [], []>} : vector<128x4xbf16>, vector<4x8xbf16>, vector<128x8xf32> -> vector<128x8xf32>
    %12 = arith.addf %2, %11 : vector<128x8xf32>
    %13 = vector.extract_strided_slice %6 {offsets = [0, 1, 0], sizes = [8, 16, 4], strides = [1, 1, 1]} : vector<8x18x4xbf16> to vector<8x16x4xbf16>
    %14 = vector.shape_cast %13 : vector<8x16x4xbf16> to vector<128x4xbf16>
    %15 = vector.extract_strided_slice %1 {offsets = [0, 1, 0, 0], sizes = [1, 1, 4, 8], strides = [1, 1, 1, 1]} : vector<3x3x4x8xbf16> to vector<1x1x4x8xbf16>
    %16 = vector.shape_cast %15 : vector<1x1x4x8xbf16> to vector<4x8xbf16>
    %cst_7 = arith.constant dense<0.000000e+00> : vector<128x8xf32>
    %17 = tpu.matmul %14, %16, %cst_7 {dimension_numbers = #tpu.dot_dimension_numbers<[1], [0], [0], [1], [0, 0, 1, 1], [], []>} : vector<128x4xbf16>, vector<4x8xbf16>, vector<128x8xf32> -> vector<128x8xf32>
    %18 = arith.addf %12, %17 : vector<128x8xf32>
    %19 = vector.extract_strided_slice %6 {offsets = [0, 2, 0], sizes = [8, 16, 4], strides = [1, 1, 1]} : vector<8x18x4xbf16> to vector<8x16x4xbf16>
    %20 = vector.shape_cast %19 : vector<8x16x4xbf16> to vector<128x4xbf16>
    %21 = vector.extract_strided_slice %1 {offsets = [0, 2, 0, 0], sizes = [1, 1, 4, 8], strides = [1, 1, 1, 1]} : vector<3x3x4x8xbf16> to vector<1x1x4x8xbf16>
    %22 = vector.shape_cast %21 : vector<1x1x4x8xbf16> to vector<4x8xbf16>
    %cst_8 = arith.constant dense<0.000000e+00> : vector<128x8xf32>
    %23 = tpu.matmul %20, %22, %cst_8 {dimension_numbers = #tpu.dot_dimension_numbers<[1], [0], [0], [1], [0, 0, 1, 1], [], []>} : vector<128x4xbf16>, vector<4x8xbf16>, vector<128x8xf32> -> vector<128x8xf32>
    %24 = arith.addf %18, %23 : vector<128x8xf32>
    %c1_i32 = arith.constant 1 : i32
    %25 = arith.addi %0, %c1_i32 : i32
    %c0_9 = arith.constant 0 : index
    %26 = arith.index_cast %25 : i32 to index
    %c0_10 = arith.constant 0 : index
    %c0_11 = arith.constant 0 : index
    %27 = vector.load %arg2[%c0_9, %26, %c0_10, %c0_11] : memref<1x18x18x4xbf16, #tpu.memory_space<vmem>>, vector<1x8x18x4xbf16>
    %28 = vector.shape_cast %27 : vector<1x8x18x4xbf16> to vector<8x18x4xbf16>
    %29 = vector.extract_strided_slice %28 {offsets = [0, 0, 0], sizes = [8, 16, 4], strides = [1, 1, 1]} : vector<8x18x4xbf16> to vector<8x16x4xbf16>
    %30 = vector.shape_cast %29 : vector<8x16x4xbf16> to vector<128x4xbf16>
    %31 = vector.extract_strided_slice %1 {offsets = [1, 0, 0, 0], sizes = [1, 1, 4, 8], strides = [1, 1, 1, 1]} : vector<3x3x4x8xbf16> to vector<1x1x4x8xbf16>
    %32 = vector.shape_cast %31 : vector<1x1x4x8xbf16> to vector<4x8xbf16>
    %cst_12 = arith.constant dense<0.000000e+00> : vector<128x8xf32>
    %33 = tpu.matmul %30, %32, %cst_12 {dimension_numbers = #tpu.dot_dimension_numbers<[1], [0], [0], [1], [0, 0, 1, 1], [], []>} : vector<128x4xbf16>, vector<4x8xbf16>, vector<128x8xf32> -> vector<128x8xf32>
    %34 = arith.addf %24, %33 : vector<128x8xf32>
    %35 = vector.extract_strided_slice %28 {offsets = [0, 1, 0], sizes = [8, 16, 4], strides = [1, 1, 1]} : vector<8x18x4xbf16> to vector<8x16x4xbf16>
    %36 = vector.shape_cast %35 : vector<8x16x4xbf16> to vector<128x4xbf16>
    %37 = vector.extract_strided_slice %1 {offsets = [1, 1, 0, 0], sizes = [1, 1, 4, 8], strides = [1, 1, 1, 1]} : vector<3x3x4x8xbf16> to vector<1x1x4x8xbf16>
    %38 = vector.shape_cast %37 : vector<1x1x4x8xbf16> to vector<4x8xbf16>
    %cst_13 = arith.constant dense<0.000000e+00> : vector<128x8xf32>
    %39 = tpu.matmul %36, %38, %cst_13 {dimension_numbers = #tpu.dot_dimension_numbers<[1], [0], [0], [1], [0, 0, 1, 1], [], []>} : vector<128x4xbf16>, vector<4x8xbf16>, vector<128x8xf32> -> vector<128x8xf32>
    %40 = arith.addf %34, %39 : vector<128x8xf32>
    %41 = vector.extract_strided_slice %28 {offsets = [0, 2, 0], sizes = [8, 16, 4], strides = [1, 1, 1]} : vector<8x18x4xbf16> to vector<8x16x4xbf16>
    %42 = vector.shape_cast %41 : vector<8x16x4xbf16> to vector<128x4xbf16>
    %43 = vector.extract_strided_slice %1 {offsets = [1, 2, 0, 0], sizes = [1, 1, 4, 8], strides = [1, 1, 1, 1]} : vector<3x3x4x8xbf16> to vector<1x1x4x8xbf16>
    %44 = vector.shape_cast %43 : vector<1x1x4x8xbf16> to vector<4x8xbf16>
    %cst_14 = arith.constant dense<0.000000e+00> : vector<128x8xf32>
    %45 = tpu.matmul %42, %44, %cst_14 {dimension_numbers = #tpu.dot_dimension_numbers<[1], [0], [0], [1], [0, 0, 1, 1], [], []>} : vector<128x4xbf16>, vector<4x8xbf16>, vector<128x8xf32> -> vector<128x8xf32>
    %46 = arith.addf %40, %45 : vector<128x8xf32>
    %c2_i32 = arith.constant 2 : i32
    %47 = arith.addi %0, %c2_i32 : i32
    %c0_15 = arith.constant 0 : index
    %48 = arith.index_cast %47 : i32 to index
    %c0_16 = arith.constant 0 : index
    %c0_17 = arith.constant 0 : index
    %49 = vector.load %arg2[%c0_15, %48, %c0_16, %c0_17] : memref<1x18x18x4xbf16, #tpu.memory_space<vmem>>, vector<1x8x18x4xbf16>
    %50 = vector.shape_cast %49 : vector<1x8x18x4xbf16> to vector<8x18x4xbf16>
    %51 = vector.extract_strided_slice %50 {offsets = [0, 0, 0], sizes = [8, 16, 4], strides = [1, 1, 1]} : vector<8x18x4xbf16> to vector<8x16x4xbf16>
    %52 = vector.shape_cast %51 : vector<8x16x4xbf16> to vector<128x4xbf16>
    %53 = vector.extract_strided_slice %1 {offsets = [2, 0, 0, 0], sizes = [1, 1, 4, 8], strides = [1, 1, 1, 1]} : vector<3x3x4x8xbf16> to vector<1x1x4x8xbf16>
    %54 = vector.shape_cast %53 : vector<1x1x4x8xbf16> to vector<4x8xbf16>
    %cst_18 = arith.constant dense<0.000000e+00> : vector<128x8xf32>
    %55 = tpu.matmul %52, %54, %cst_18 {dimension_numbers = #tpu.dot_dimension_numbers<[1], [0], [0], [1], [0, 0, 1, 1], [], []>} : vector<128x4xbf16>, vector<4x8xbf16>, vector<128x8xf32> -> vector<128x8xf32>
    %56 = arith.addf %46, %55 : vector<128x8xf32>
    %57 = vector.extract_strided_slice %50 {offsets = [0, 1, 0], sizes = [8, 16, 4], strides = [1, 1, 1]} : vector<8x18x4xbf16> to vector<8x16x4xbf16>
    %58 = vector.shape_cast %57 : vector<8x16x4xbf16> to vector<128x4xbf16>
    %59 = vector.extract_strided_slice %1 {offsets = [2, 1, 0, 0], sizes = [1, 1, 4, 8], strides = [1, 1, 1, 1]} : vector<3x3x4x8xbf16> to vector<1x1x4x8xbf16>
    %60 = vector.shape_cast %59 : vector<1x1x4x8xbf16> to vector<4x8xbf16>
    %cst_19 = arith.constant dense<0.000000e+00> : vector<128x8xf32>
    %61 = tpu.matmul %58, %60, %cst_19 {dimension_numbers = #tpu.dot_dimension_numbers<[1], [0], [0], [1], [0, 0, 1, 1], [], []>} : vector<128x4xbf16>, vector<4x8xbf16>, vector<128x8xf32> -> vector<128x8xf32>
    %62 = arith.addf %56, %61 : vector<128x8xf32>
    %63 = vector.extract_strided_slice %50 {offsets = [0, 2, 0], sizes = [8, 16, 4], strides = [1, 1, 1]} : vector<8x18x4xbf16> to vector<8x16x4xbf16>
    %64 = vector.shape_cast %63 : vector<8x16x4xbf16> to vector<128x4xbf16>
    %65 = vector.extract_strided_slice %1 {offsets = [2, 2, 0, 0], sizes = [1, 1, 4, 8], strides = [1, 1, 1, 1]} : vector<3x3x4x8xbf16> to vector<1x1x4x8xbf16>
    %66 = vector.shape_cast %65 : vector<1x1x4x8xbf16> to vector<4x8xbf16>
    %cst_20 = arith.constant dense<0.000000e+00> : vector<128x8xf32>
    %67 = tpu.matmul %64, %66, %cst_20 {dimension_numbers = #tpu.dot_dimension_numbers<[1], [0], [0], [1], [0, 0, 1, 1], [], []>} : vector<128x4xbf16>, vector<4x8xbf16>, vector<128x8xf32> -> vector<128x8xf32>
    %68 = arith.addf %62, %67 : vector<128x8xf32>
    %c0_21 = arith.constant 0 : index
    %c0_22 = arith.constant 0 : index
    %69 = vector.load %arg4[%c0_21, %c0_22] : memref<1x8xf32, #tpu.memory_space<vmem>>, vector<1x8xf32>
    %70 = vector.broadcast %69 : vector<1x8xf32> to vector<128x8xf32>
    %71 = arith.addf %68, %70 : vector<128x8xf32>
    %cst_23 = arith.constant 0.000000e+00 : f32
    %72 = vector.broadcast %cst_23 : f32 to vector<128x8xf32>
    %73 = arith.maximumf %71, %72 : vector<128x8xf32>
    %74 = vector.shape_cast %73 : vector<128x8xf32> to vector<8x16x8xf32>
    %c0_24 = arith.constant 0 : index
    %c0_25 = arith.constant 0 : index
    %c0_26 = arith.constant 0 : index
    %c0_27 = arith.constant 0 : index
    %75 = vector.load %arg5[%c0_24, %c0_25, %c0_26, %c0_27] : memref<1x8x16x8xf32, #tpu.memory_space<vmem>>, vector<1x8x16x8xf32>
    %76 = vector.shape_cast %75 : vector<1x8x16x8xf32> to vector<8x16x8xf32>
    %77 = vector.shape_cast %74 : vector<8x16x8xf32> to vector<1x8x16x8xf32>
    tpu.vector_store %arg5[%c0_24, %c0_25, %c0_26, %c0_27], %77 {strides = array<i32>} : memref<1x8x16x8xf32, #tpu.memory_space<vmem>>, vector<1x8x16x8xf32>,
    %c0_i32_28 = arith.constant 0 : i32
    %78 = arith.cmpi eq, %arg1, %c0_i32_28 : i32
    %79 = arith.extui %78 : i1 to i32
    %c0_i32_29 = arith.constant 0 : i32
    %80 = arith.cmpi ne, %79, %c0_i32_29 : i32
    scf.if %80 {
      %cst_38 = arith.constant 0.000000e+00 : f32
      %91 = vector.broadcast %cst_38 : f32 to vector<1x2x8xf32>
      %c0_39 = arith.constant 0 : index
      %c0_40 = arith.constant 0 : index
      %c0_41 = arith.constant 0 : index
      %92 = vector.load %arg6[%c0_39, %c0_40, %c0_41] : memref<1x2x8xf32, #tpu.memory_space<vmem>>, vector<1x2x8xf32>
      tpu.vector_store %arg6[%c0_39, %c0_40, %c0_41], %91 {strides = array<i32>} : memref<1x2x8xf32, #tpu.memory_space<vmem>>, vector<1x2x8xf32>,
    } else {
    }
    %cst_30 = arith.constant dense<0.000000e+00> : vector<8xf32>
    %81 = vector.multi_reduction <add>, %73, %cst_30 [0] : vector<128x8xf32> to vector<8xf32>
    %82 = vector.shape_cast %81 : vector<8xf32> to vector<1x8xf32>
    %83 = arith.mulf %73, %73 : vector<128x8xf32>
    %cst_31 = arith.constant dense<0.000000e+00> : vector<8xf32>
    %84 = vector.multi_reduction <add>, %83, %cst_31 [0] : vector<128x8xf32> to vector<8xf32>
    %85 = vector.shape_cast %84 : vector<8xf32> to vector<1x8xf32>
    %c0_32 = arith.constant 0 : index
    %c0_33 = arith.constant 0 : index
    %c0_34 = arith.constant 0 : index
    %86 = vector.load %arg6[%c0_32, %c0_33, %c0_34] : memref<1x2x8xf32, #tpu.memory_space<vmem>>, vector<1x2x8xf32>
    %87 = tpu.concatenate %82, %85 in 0 : vector<1x8xf32>, vector<1x8xf32> -> vector<2x8xf32>
    %88 = vector.shape_cast %87 : vector<2x8xf32> to vector<1x2x8xf32>
    %89 = arith.addf %86, %88 : vector<1x2x8xf32>
    %c0_35 = arith.constant 0 : index
    %c0_36 = arith.constant 0 : index
    %c0_37 = arith.constant 0 : index
    %90 = vector.load %arg6[%c0_35, %c0_36, %c0_37] : memref<1x2x8xf32, #tpu.memory_space<vmem>>, vector<1x2x8xf32>
    tpu.vector_store %arg6[%c0_35, %c0_36, %c0_37], %89 {strides = array<i32>} : memref<1x2x8xf32, #tpu.memory_space<vmem>>, vector<1x2x8xf32>,
    return
  }
  func.func @transform_0(%arg0: i32, %arg1: i32) -> (i32, i32, i32, i32) {
    %c0_i32 = arith.constant 0 : i32
    %c0_i32_0 = arith.constant 0 : i32
    %c0_i32_1 = arith.constant 0 : i32
    %c0_i32_2 = arith.constant 0 : i32
    return %arg0, %c0_i32, %c0_i32_0, %c0_i32_1 : i32, i32, i32, i32
  }
  func.func @transform_1(%arg0: i32, %arg1: i32) -> (i32, i32, i32, i32) {
    %c0_i32 = arith.constant 0 : i32
    %c0_i32_0 = arith.constant 0 : i32
    %c0_i32_1 = arith.constant 0 : i32
    %c0_i32_2 = arith.constant 0 : i32
    %c0_i32_3 = arith.constant 0 : i32
    return %c0_i32, %c0_i32_0, %c0_i32_1, %c0_i32_2 : i32, i32, i32, i32
  }
  func.func @transform_2(%arg0: i32, %arg1: i32) -> (i32, i32) {
    %c0_i32 = arith.constant 0 : i32
    %c0_i32_0 = arith.constant 0 : i32
    %c0_i32_1 = arith.constant 0 : i32
    return %c0_i32, %c0_i32_0 : i32, i32
  }
  func.func @transform_3(%arg0: i32, %arg1: i32) -> (i32, i32, i32, i32) {
    %c0_i32 = arith.constant 0 : i32
    %c0_i32_0 = arith.constant 0 : i32
    %c0_i32_1 = arith.constant 0 : i32
    return %arg0, %arg1, %c0_i32, %c0_i32_0 : i32, i32, i32, i32
  }
  func.func @transform_4(%arg0: i32, %arg1: i32) -> (i32, i32, i32) {
    %c0_i32 = arith.constant 0 : i32
    %c0_i32_0 = arith.constant 0 : i32
    %c0_i32_1 = arith.constant 0 : i32
    return %arg0, %c0_i32, %c0_i32_0 : i32, i32, i32
  }
}

</mosaic_0001>

<llo_original>
// kernel: tpu_custom_call.1
$region0: #{tpu_custom_call.1}
  #allocation0 [shape = 'u32[]', space=smem, size = 0x4, offset = 0x4, fixed_abs, tag = 'smem constant byte address 0x4 - core index']
  #allocation1 [shape = 'u32[144,128]{1,0:T(1,128)}', space=vmem, size = 0x12000, scoped, tag = 'internal scratch']
  %s0 = inlined_call_operand.vmem [shape: bf16[2,18,18,4], index: 0, kind: input, shape index: {}]
  %s1 = inlined_call_operand.vmem [shape: bf16[3,3,4,8], index: 1, kind: input, shape index: {}]
  %s2 = inlined_call_operand.vmem [shape: f32[1,8], index: 2, kind: input, shape index: {}]
  %s3 = inlined_call_operand.vmem [shape: f32[2,16,16,8], index: 3, kind: output, shape index: {0}]
  %s4 = inlined_call_operand.hbm [shape: f32[2,2,8], index: 4, kind: output, shape index: {1}]
  %5 = xla_tuple %s3, %s4
  %s6 = sld [smem:[#allocation0]]
  $region57: #{tpu_custom_call.1} parent=0
    _
  %s8 = ssub.s32 1, %s6
  %s9 = scalar_select 0, %s8, %s6
  $region1: #{tpu_custom_call.1} parent=0
    #allocation2 [shape = 'u8[2048]{0}', space=vmem, size = 0x800, scoped, tag = 'output window, operand 1']
    #allocation3 [shape = 's32[2]{0}', space=sflag, size = 0x8, scoped, tag = 'scoped memory for tpu_custom_call.1']
    %10 = vsyncpa [#allocation3], 0
    %s11 = scalar_lea.sflag [#allocation3], 1
    %12 = vsyncpa %s11, 0
    loop: start=0, step=1, limit=6
    $region2: #{tpu_custom_call.1} parent=1 // loop_pre_header
      _
    $region3: #{tpu_custom_call.1} parent=1 // loop_header
      %s14 = sphi 0, %s18
      %p15 = scmp.ge.s32.totalorder %s14, 6
      %s21 = sphi 0, %s33
      %s22 = sphi 0, %s29
      %s23 = sphi 0, %s21
      %s24 = sphi 0, %s22
      %s25 = sphi 0, %s23
      %s26 = sphi 0, %s24
      %s36 = sphi 0, %s38
      %s39 = sphi 0, %s36
      %s40 = sphi 0, %s39
      %s56 = sphi 0, %s40
      %s60 = sphi 0, %s60
      %s62 = sphi 0, %s60
      %s63 = sphi 0, %s62
      %s77 = sphi 0, %s63
      %s81 = sphi 0, %s81
      %s83 = sphi 0, %s81
      %s84 = sphi 0, %s83
      %s98 = sphi 0, %s84
      %s106 = sphi 0, %s108
      %s109 = sphi 0, %s106
      %s110 = sphi 0, %s109
      %s126 = sphi 0, %s110
      %s132 = sphi 0, %s134
      %s135 = sphi 0, %s132
      %s136 = sphi 0, %s135
      %s152 = sphi 0, %s136
    $region4: #{tpu_custom_call.1} parent=1 // loop_header_branch
      %17 = sbr.rel (%p15) target = $region8
    $region5: #{tpu_custom_call.1} parent=1 // loop_body
      %s19 = ssub.s32 %s14, 1
      %s20 = ssub.s32 %s14, 2
      %s27 = sadd.s32 1, %s22
      %p28 = scmp.ge.s32.totalorder %s27, 2
      %s29 = scalar_select %p28, 0, %s27
      %s30 = sadd.s32 1, %s21
      %s31 = scalar_select %p28, %s30, %s21
      %p32 = scmp.ge.s32.totalorder %s31, 2
      %s33 = scalar_select %p32, 0, %s31
      %s34 = ssub.s32 %s21, %s33
      %p35 = scmp.eq.s32.totalorder %s34, 0
      %s37 = sadd.s32 %s36, 1
      %s38 = scalar_select %p35, %s36, %s37
      %p41 = pneg %p35
      %p42 = scmp.eq.s32.totalorder %s14, 3
      %p43 = por %p41, %p42
      %p44 = scmp.ne.s32.totalorder %s36, %s39
      %p45 = scmp.eq.s32.totalorder %s14, 0
      %p46 = por %p44, %p45
      %p47 = scmp.ne.s32.totalorder %s36, %s39
      %p48 = scmp.eq.s32.totalorder %s19, 3
      %p49 = por %p47, %p48
      %p50 = scmp.ne.s32.totalorder %s39, %s40
      %p51 = scmp.eq.s32.totalorder %s19, 0
      %p52 = por %p50, %p51
      %p53 = scmp.ne.s32.totalorder %s39, %s40
      %p54 = scmp.eq.s32.totalorder %s20, 3
      %p55 = por %p53, %p54
      %p57 = scmp.ne.s32.totalorder %s40, %s56
      %p58 = scmp.eq.s32.totalorder %s20, 0
      %p59 = por %p57, %p58
      %s61 = sadd.s32 %s60, 1
      %p64 = scmp.eq.s32.totalorder %s14, 3
      %p65 = scmp.ne.s32.totalorder %s60, %s62
      %p66 = scmp.eq.s32.totalorder %s14, 0
      %p67 = por %p65, %p66
      %p68 = scmp.ne.s32.totalorder %s60, %s62
      %p69 = scmp.eq.s32.totalorder %s19, 3
      %p70 = por %p68, %p69
      %p71 = scmp.ne.s32.totalorder %s62, %s63
      %p72 = scmp.eq.s32.totalorder %s19, 0
      %p73 = por %p71, %p72
      %p74 = scmp.ne.s32.totalorder %s62, %s63
      %p75 = scmp.eq.s32.totalorder %s20, 3
      %p76 = por %p74, %p75
      %p78 = scmp.ne.s32.totalorder %s63, %s77
      %p79 = scmp.eq.s32.totalorder %s20, 0
      %p80 = por %p78, %p79
      %s82 = sadd.s32 %s81, 1
      %p85 = scmp.eq.s32.totalorder %s14, 3
      %p86 = scmp.ne.s32.totalorder %s81, %s83
      %p87 = scmp.eq.s32.totalorder %s14, 0
      %p88 = por %p86, %p87
      %p89 = scmp.ne.s32.totalorder %s81, %s83
      %p90 = scmp.eq.s32.totalorder %s19, 3
      %p91 = por %p89, %p90
      %p92 = scmp.ne.s32.totalorder %s83, %s84
      %p93 = scmp.eq.s32.totalorder %s19, 0
      %p94 = por %p92, %p93
      %p95 = scmp.ne.s32.totalorder %s83, %s84
      %p96 = scmp.eq.s32.totalorder %s20, 3
      %p97 = por %p95, %p96
      %p99 = scmp.ne.s32.totalorder %s84, %s98
      %p100 = scmp.eq.s32.totalorder %s20, 0
      %p101 = por %p99, %p100
      %s102 = ssub.s32 %s21, %s33
      %s103 = ssub.s32 %s22, %s29
      %s104 = sor.u32 %s102, %s103
      %p105 = scmp.eq.s32.totalorder %s104, 0
      %s107 = sadd.s32 %s106, 1
      %s108 = scalar_select %p105, %s106, %s107
      %p111 = pneg %p105
      %p112 = scmp.eq.s32.totalorder %s14, 3
      %p113 = por %p111, %p112
      %p114 = scmp.ne.s32.totalorder %s106, %s109
      %p115 = scmp.eq.s32.totalorder %s14, 0
      %p116 = por %p114, %p115
      %p117 = scmp.ne.s32.totalorder %s106, %s109
      %p118 = scmp.eq.s32.totalorder %s19, 3
      %p119 = por %p117, %p118
      %p120 = scmp.ne.s32.totalorder %s109, %s110
      %p121 = scmp.eq.s32.totalorder %s19, 0
      %p122 = por %p120, %p121
      %p123 = scmp.ne.s32.totalorder %s109, %s110
      %p124 = scmp.eq.s32.totalorder %s20, 3
      %p125 = por %p123, %p124
      %p127 = scmp.ne.s32.totalorder %s110, %s126
      %p128 = scmp.eq.s32.totalorder %s20, 0
      %p129 = por %p127, %p128
      %s130 = ssub.s32 %s21, %s33
      %p131 = scmp.eq.s32.totalorder %s130, 0
      %s133 = sadd.s32 %s132, 1
      %s134 = scalar_select %p131, %s132, %s133
      %p137 = pneg %p131
      %p138 = scmp.eq.s32.totalorder %s14, 3
      %p139 = por %p137, %p138
      %p140 = scmp.ne.s32.totalorder %s132, %s135
      %p141 = scmp.eq.s32.totalorder %s14, 0
      %p142 = por %p140, %p141
      %p143 = scmp.ne.s32.totalorder %s132, %s135
      %p144 = scmp.eq.s32.totalorder %s19, 3
      %p145 = por %p143, %p144
      %p146 = scmp.ne.s32.totalorder %s135, %s136
      %p147 = scmp.eq.s32.totalorder %s19, 0
      %p148 = por %p146, %p147
      %p149 = scmp.ne.s32.totalorder %s135, %s136
      %p150 = scmp.eq.s32.totalorder %s20, 3
      %p151 = por %p149, %p150
      %p153 = scmp.ne.s32.totalorder %s136, %s152
      %p154 = scmp.eq.s32.totalorder %s20, 0
      %p155 = por %p153, %p154
      %p156 = scmp.le.s32.totalorder 1, %s14
      %p157 = scmp.lt.s32.totalorder %s14, 5
      %p158 = pnand %p156, %p157
      %p159 = pneg %p158
      // Predicated region
      $region9: #{tpu_custom_call.1} parent=5 // pred_check
        _
      $region10: #{tpu_custom_call.1} parent=5 // pred_check_branch
        %161 = sbr.rel (%p158) target = $region12
      $region11: #{tpu_custom_call.1} parent=5 // pred_region
        %s162 = ssub.s32 %s14, 1
        // Predicated region
        $region13: #{tpu_custom_call.1} parent=11 // pred_check
          %p163 = pneg %p73
        $region14: #{tpu_custom_call.1} parent=11 // pred_check_branch
          %165 = sbr.rel (%p163) target = $region16
        $region15: #{tpu_custom_call.1} parent=11 // pred_region
          _
        $region16: #{tpu_custom_call.1} parent=11 // pred_fallthru
          _
        // Predicated region
        $region17: #{tpu_custom_call.1} parent=11 // pred_check
          %p166 = pneg %p94
        $region18: #{tpu_custom_call.1} parent=11 // pred_check_branch
          %168 = sbr.rel (%p166) target = $region20
        $region19: #{tpu_custom_call.1} parent=11 // pred_region
          _
        $region20: #{tpu_custom_call.1} parent=11 // pred_fallthru
          _
      $region12: #{tpu_custom_call.1} parent=5 // pred_fallthru
        _
      %p169 = scmp.lt.s32.totalorder %s14, 4
      // Predicated region
      $region21: #{tpu_custom_call.1} parent=5 // pred_check
        %p170 = pneg %p169
      $region22: #{tpu_custom_call.1} parent=5 // pred_check_branch
        %172 = sbr.rel (%p170) target = $region24
      $region23: #{tpu_custom_call.1} parent=5 // pred_region
        // Predicated region
        $region25: #{tpu_custom_call.1} parent=23 // pred_check
          %p173 = pneg %p46
        $region26: #{tpu_custom_call.1} parent=23 // pred_check_branch
          %175 = sbr.rel (%p173) target = $region28
        $region27: #{tpu_custom_call.1} parent=23 // pred_region
          %p176 = scmp.lt.s32.totalorder %s21, 1
          %s177 = scalar_select %p176, %s21, 1
          %s178 = smul.addr %s177, 54
          %s179 = smul.addr %s178, 4
          %s180 = scalar_lea.vmem %s0, %s179
        $region28: #{tpu_custom_call.1} parent=23 // pred_fallthru
          _
      $region24: #{tpu_custom_call.1} parent=5 // pred_fallthru
        _
      %p181 = scmp.le.s32.totalorder 1, %s14
      %p182 = scmp.lt.s32.totalorder %s14, 5
      %p183 = pnand %p181, %p182
      %p184 = pneg %p183
      // Predicated region
      $region29: #{tpu_custom_call.1} parent=5 // pred_check
        _
      $region30: #{tpu_custom_call.1} parent=5 // pred_check_branch
        %186 = sbr.rel (%p183) target = $region32
      $region31: #{tpu_custom_call.1} parent=5 // pred_region
        %s187 = ssub.s32 %s14, 1
        %p188 = scmp.lt.s32.totalorder %s23, 1
        %s189 = scalar_select %p188, %s23, 1
        %s190 = smul.addr %s189, 54
        %s191 = smul.addr %s190, 4
        %s192 = scalar_lea.vmem %s0, %s191
        %p193 = pneg %p52
        %p194 = pneg %p49
        %p195 = pneg %p73
        %p196 = pneg %p70
        %p197 = pneg %p94
        %p198 = pneg %p91
        %p199 = pneg %p122
        %p200 = pneg %p119
        %s201 = smul.u32 8, %s24
        %p202 = scmp.lt.s32.totalorder %s23, 1
        %s203 = scalar_select %p202, %s23, 1
        %p204 = scmp.lt.s32.totalorder %s201, 15
        %s205 = scalar_select %p204, %s201, 15
        %s206 = smul.addr %s205, 2
        %s207 = smul.addr %s203, 32
        %s208 = sadd.s32 %s206, %s207
        %s209 = smul.addr %s208, 8
        %s210 = scalar_lea.vmem %s3, %s209
        %p211 = pneg %p148
        %p212 = pneg %p145
        %s213 = sand.u32 %s135, 1
        %s214 = scalar_lea.sflag [#allocation3], %s213
        %s215 = sand.u32 %s135, 1
        %s216 = smul.addr %s215, 2
        %s217 = scalar_lea.vmem [#allocation2], %s216
        %p218 = scmp.lt.s32.totalorder %s23, 1
        %s219 = scalar_select %p218, %s23, 1
        %s220 = smul.addr %s219, 54
        %s221 = smul.addr %s220, 4
        %s222 = scalar_lea.vmem %s0, %s221
        %s223 = smul.u32 8, %s24
        %p224 = scmp.lt.s32.totalorder %s23, 1
        %s225 = scalar_select %p224, %s23, 1
        %p226 = scmp.lt.s32.totalorder %s223, 15
        %s227 = scalar_select %p226, %s223, 15
        %s228 = smul.addr %s227, 2
        %s229 = smul.addr %s225, 32
        %s230 = sadd.s32 %s228, %s229
        %s231 = smul.addr %s230, 8
        %s232 = scalar_lea.vmem %s3, %s231
        %s233 = smul.u32 8, %s24
        %s235 = smul.u32 %s24, 8
        %v236 = vld [vmem:[%s1] sm:$0x3]
        %v237 = vld [vmem:[%s1 + $0x2] sm:$0x3]
        %v238 = vld [vmem:[%s1 + $0x4] sm:$0x3]
        %v239 = vld [vmem:[%s1 + $0x6] sm:$0x3]
        %v240 = vld [vmem:[%s1 + $0x8] sm:$0x3]
        %v241 = vld [vmem:[%s1 + $0xa] sm:$0x3]
        %v242 = vld [vmem:[%s1 + $0xc] sm:$0x3]
        %v243 = vld [vmem:[%s1 + $0xe] sm:$0x3]
        %v244 = vld [vmem:[%s1 + $0x10] sm:$0x3]
        %s245 = smul.u32 %s235, 3
        %s246 = smul.addr %s245, 4
        %s247 = scalar_lea.vmem %s222, %s246
        %v248 = vld [vmem:[%s247] sm:$0xf]
        %v249 = vld [vmem:[%s247 + $0x4] sm:$0xf]
        %v250 = vld [vmem:[%s247 + $0x8] sm:$0x1]
        %v251 = vld [vmem:[%s247 + $0xc] sm:$0xf]
        %v252 = vld [vmem:[%s247 + $0x10] sm:$0xf]
        %v253 = vld [vmem:[%s247 + $0x14] sm:$0x1]
        %v254 = vld [vmem:[%s247 + $0x18] sm:$0xf]
        %v255 = vld [vmem:[%s247 + $0x1c] sm:$0xf]
        %v256 = vld [vmem:[%s247 + $0x20] sm:$0x1]
        %v257 = vld [vmem:[%s247 + $0x24] sm:$0xf]
        %v258 = vld [vmem:[%s247 + $0x28] sm:$0xf]
        %v259 = vld [vmem:[%s247 + $0x2c] sm:$0x1]
        %v260 = vld [vmem:[%s247 + $0x30] sm:$0xf]
        %v261 = vld [vmem:[%s247 + $0x34] sm:$0xf]
        %v262 = vld [vmem:[%s247 + $0x38] sm:$0x1]
        %v263 = vld [vmem:[%s247 + $0x3c] sm:$0xf]
        %v264 = vld [vmem:[%s247 + $0x40] sm:$0xf]
        %v265 = vld [vmem:[%s247 + $0x44] sm:$0x1]
        %v266 = vld [vmem:[%s247 + $0x48] sm:$0xf]
        %v267 = vld [vmem:[%s247 + $0x4c] sm:$0xf]
        %v268 = vld [vmem:[%s247 + $0x50] sm:$0x1]
        %v269 = vld [vmem:[%s247 + $0x54] sm:$0xf]
        %v270 = vld [vmem:[%s247 + $0x58] sm:$0xf]
        %v271 = vld [vmem:[%s247 + $0x5c] sm:$0x1]
        %vm272 = vsmask.f32 3328
        %vm273 = vsmask.f32 7440
        %vm274 = vmor %vm272, %vm273
        %v276 = vshrl.u32 %v248, 16
        %v278 = vrot.slane %v276, 4
        %v279 = vshll.u32 %v248, 16
        %v281 = vrot.slane %v279, 5
        %v282 = vor.u32 %v278, %v281
        %v283 = vrot.slane %v282, 4
        %v285 = vshll.u32 %v249, 16
        %v287 = vrot.slane %v285, 5
        %v288 = vsel %vm274, %v283, %v287
        %v289 = vshrl.u32 %v249, 16
        %v291 = vrot.slane %v289, 4
        %v292 = vor.u32 %v291, %v287
        %v293 = vrot.slane %v292, 4
        %v295 = vshll.u32 %v250, 16
        %v297 = vrot.slane %v295, 5
        %v298 = vsel %vm274, %v293, %v297
        %v300 = vshrl.u32 %v251, 16
        %v302 = vrot.slane %v300, 4
        %v303 = vshll.u32 %v251, 16
        %v305 = vrot.slane %v303, 5
        %v306 = vor.u32 %v302, %v305
        %v307 = vrot.slane %v306, 4
        %v309 = vshll.u32 %v252, 16
        %v311 = vrot.slane %v309, 5
        %v312 = vsel %vm274, %v307, %v311
        %v313 = vshrl.u32 %v252, 16
        %v315 = vrot.slane %v313, 4
        %v316 = vor.u32 %v315, %v311
        %v317 = vrot.slane %v316, 4
        %v319 = vshll.u32 %v253, 16
        %v321 = vrot.slane %v319, 5
        %v322 = vsel %vm274, %v317, %v321
        %v324 = vshrl.u32 %v254, 16
        %v326 = vrot.slane %v324, 4
        %v327 = vshll.u32 %v254, 16
        %v329 = vrot.slane %v327, 5
        %v330 = vor.u32 %v326, %v329
        %v331 = vrot.slane %v330, 4
        %v333 = vshll.u32 %v255, 16
        %v335 = vrot.slane %v333, 5
        %v336 = vsel %vm274, %v331, %v335
        %v337 = vshrl.u32 %v255, 16
        %v339 = vrot.slane %v337, 4
        %v340 = vor.u32 %v339, %v335
        %v341 = vrot.slane %v340, 4
        %v343 = vshll.u32 %v256, 16
        %v345 = vrot.slane %v343, 5
        %v346 = vsel %vm274, %v341, %v345
        %v348 = vshrl.u32 %v257, 16
        %v350 = vrot.slane %v348, 4
        %v351 = vshll.u32 %v257, 16
        %v353 = vrot.slane %v351, 5
        %v354 = vor.u32 %v350, %v353
        %v355 = vrot.slane %v354, 4
        %v357 = vshll.u32 %v258, 16
        %v359 = vrot.slane %v357, 5
        %v360 = vsel %vm274, %v355, %v359
        %v361 = vshrl.u32 %v258, 16
        %v363 = vrot.slane %v361, 4
        %v364 = vor.u32 %v363, %v359
        %v365 = vrot.slane %v364, 4
        %v367 = vshll.u32 %v259, 16
        %v369 = vrot.slane %v367, 5
        %v370 = vsel %vm274, %v365, %v369
        %v372 = vshrl.u32 %v260, 16
        %v374 = vrot.slane %v372, 4
        %v375 = vshll.u32 %v260, 16
        %v377 = vrot.slane %v375, 5
        %v378 = vor.u32 %v374, %v377
        %v379 = vrot.slane %v378, 4
        %v381 = vshll.u32 %v261, 16
        %v383 = vrot.slane %v381, 5
        %v384 = vsel %vm274, %v379, %v383
        %v385 = vshrl.u32 %v261, 16
        %v387 = vrot.slane %v385, 4
        %v388 = vor.u32 %v387, %v383
        %v389 = vrot.slane %v388, 4
        %v391 = vshll.u32 %v262, 16
        %v393 = vrot.slane %v391, 5
        %v394 = vsel %vm274, %v389, %v393
        %v396 = vshrl.u32 %v263, 16
        %v398 = vrot.slane %v396, 4
        %v399 = vshll.u32 %v263, 16
        %v401 = vrot.slane %v399, 5
        %v402 = vor.u32 %v398, %v401
        %v403 = vrot.slane %v402, 4
        %v405 = vshll.u32 %v264, 16
        %v407 = vrot.slane %v405, 5
        %v408 = vsel %vm274, %v403, %v407
        %v409 = vshrl.u32 %v264, 16
        %v411 = vrot.slane %v409, 4
        %v412 = vor.u32 %v411, %v407
        %v413 = vrot.slane %v412, 4
        %v415 = vshll.u32 %v265, 16
        %v417 = vrot.slane %v415, 5
        %v418 = vsel %vm274, %v413, %v417
        %v420 = vshrl.u32 %v266, 16
        %v422 = vrot.slane %v420, 4
        %v423 = vshll.u32 %v266, 16
        %v425 = vrot.slane %v423, 5
        %v426 = vor.u32 %v422, %v425
        %v427 = vrot.slane %v426, 4
        %v429 = vshll.u32 %v267, 16
        %v431 = vrot.slane %v429, 5
        %v432 = vsel %vm274, %v427, %v431
        %v433 = vshrl.u32 %v267, 16
        %v435 = vrot.slane %v433, 4
        %v436 = vor.u32 %v435, %v431
        %v437 = vrot.slane %v436, 4
        %v439 = vshll.u32 %v268, 16
        %v441 = vrot.slane %v439, 5
        %v442 = vsel %vm274, %v437, %v441
        %v444 = vshrl.u32 %v269, 16
        %v446 = vrot.slane %v444, 4
        %v447 = vshll.u32 %v269, 16
        %v449 = vrot.slane %v447, 5
        %v450 = vor.u32 %v446, %v449
        %v451 = vrot.slane %v450, 4
        %v453 = vshll.u32 %v270, 16
        %v455 = vrot.slane %v453, 5
        %v456 = vsel %vm274, %v451, %v455
        %v457 = vshrl.u32 %v270, 16
        %v459 = vrot.slane %v457, 4
        %v460 = vor.u32 %v459, %v455
        %v461 = vrot.slane %v460, 4
        %v463 = vshll.u32 %v271, 16
        %v465 = vrot.slane %v463, 5
        %v466 = vsel %vm274, %v461, %v465
        %v467 = vunpack.c.l.b16 %v288
        %v468 = vunpack.c.l.b16 %v298
        %v469 = vunpack.c.l.b16 %v312
        %v470 = vunpack.c.l.b16 %v322
        %v471 = vunpack.c.l.b16 %v336
        %v472 = vunpack.c.l.b16 %v346
        %v473 = vunpack.c.l.b16 %v360
        %v474 = vunpack.c.l.b16 %v370
        %v475 = vunpack.c.l.b16 %v384
        %v476 = vunpack.c.l.b16 %v394
        %v477 = vunpack.c.l.b16 %v408
        %v478 = vunpack.c.l.b16 %v418
        %v479 = vunpack.c.l.b16 %v432
        %v480 = vunpack.c.l.b16 %v442
        %v481 = vunpack.c.l.b16 %v456
        %v482 = vunpack.c.l.b16 %v466
        %v483 = vpack.c.b16 %v468, %v467
        %v484 = vpack.c.b16 %v470, %v469
        %v485 = vpack.c.b16 %v472, %v471
        %v486 = vpack.c.b16 %v474, %v473
        %v487 = vpack.c.b16 %v476, %v475
        %v488 = vpack.c.b16 %v478, %v477
        %v489 = vpack.c.b16 %v480, %v479
        %v490 = vpack.c.b16 %v482, %v481
        %vm491 = vcmask 31744
        %v493 = vsel %vm491, %v483, 0
        %v496 = vsel %vm491, %v484, 0
        %v499 = vsel %vm491, %v485, 0
        %v502 = vsel %vm491, %v486, 0
        %v505 = vsel %vm491, %v487, 0
        %v508 = vsel %vm491, %v488, 0
        %v511 = vsel %vm491, %v489, 0
        %v514 = vsel %vm491, %v490, 0
        %vm516 = vcmask 1041408
        %v518 = vsel %vm516, %v237, 0
        %520 = vmatprep.subr.bf16.mxu0 0
        %521 = vmatpush1.bf16.msra.mxu0 %v518
        %522 = vmatprep.subr.bf16.mxu0 0
        %523 = vmatpush1.bf16.msra.mxu0 0
        %524 = vmatprep.subr.bf16.mxu0 0
        %525 = vmatpush1.bf16.msra.mxu0 0
        %526 = vmatprep.subr.bf16.mxu0 0
        %527 = vmatpush1.bf16.msra.mxu0 0
        %528 = vmatprep.subr.bf16.mxu0 0
        %529 = vmatpush1.bf16.msra.mxu0 0
        %530 = vmatprep.subr.bf16.mxu0 0
        %531 = vmatpush1.bf16.msra.mxu0 0
        %532 = vmatprep.subr.bf16.mxu0 0
        %533 = vmatpush1.bf16.msra.mxu0 0
        %534 = vmatprep.subr.bf16.mxu0 0
        %535 = vmatpush1.bf16.msra.mxu0 0
        %536 = vmatprep.subr.bf16.mxu0 0
        %537 = vmatpush1.bf16.msra.mxu0 0
        %538 = vmatprep.subr.bf16.mxu0 0
        %539 = vmatpush1.bf16.msra.mxu0 0
        %540 = vmatprep.subr.bf16.mxu0 0
        %541 = vmatpush1.bf16.msra.mxu0 0
        %542 = vmatprep.subr.bf16.mxu0 0
        %543 = vmatpush1.bf16.msra.mxu0 0
        %544 = vmatprep.subr.bf16.mxu0 0
        %545 = vmatpush1.bf16.msra.mxu0 0
        %546 = vmatprep.subr.bf16.mxu0 0
        %547 = vmatpush1.bf16.msra.mxu0 0
        %548 = vmatprep.subr.bf16.mxu0 0
        %549 = vmatpush1.bf16.msra.mxu0 0
        %550 = vmatprep.subr.bf16.mxu0 0
        %551 = vmatpush1.bf16.msra.mxu0 0
        %552 = vmatprep.mubr.bf16.mxu0 0
        %553 = vmatmul.mubr.bf16.gmra.mrb[0].mxu0 %v493
        %v554 = vpop.f32.mrb[0].mxu0
        %v555 = vadd.f32 0.0, %v554
        %v556 = vpop.f32.mrb[0].mxu0
        %v557 = vpop.f32.mrb[0].mxu0
        %v558 = vadd.f32 0.0, %v557
        %v559 = vpop.f32.mrb[0].mxu0
        %560 = vmatprep.mubr.bf16.mxu0 0
        %561 = vmatmul.mubr.bf16.gmra.mrb[0].mxu0 %v496
        %v562 = vpop.f32.mrb[0].mxu0
        %v563 = vadd.f32 0.0, %v562
        %v564 = vpop.f32.mrb[0].mxu0
        %v565 = vpop.f32.mrb[0].mxu0
        %v566 = vadd.f32 0.0, %v565
        %v567 = vpop.f32.mrb[0].mxu0
        %568 = vmatprep.mubr.bf16.mxu0 0
        %569 = vmatmul.mubr.bf16.gmra.mrb[0].mxu0 %v499
        %v570 = vpop.f32.mrb[0].mxu0
        %v571 = vadd.f32 0.0, %v570
        %v572 = vpop.f32.mrb[0].mxu0
        %v573 = vpop.f32.mrb[0].mxu0
        %v574 = vadd.f32 0.0, %v573
        %v575 = vpop.f32.mrb[0].mxu0
        %576 = vmatprep.mubr.bf16.mxu0 0
        %577 = vmatmul.mubr.bf16.gmra.mrb[0].mxu0 %v502
        %v578 = vpop.f32.mrb[0].mxu0
        %v579 = vadd.f32 0.0, %v578
        %v580 = vpop.f32.mrb[0].mxu0
        %v581 = vpop.f32.mrb[0].mxu0
        %v582 = vadd.f32 0.0, %v581
        %v583 = vpop.f32.mrb[0].mxu0
        %584 = vmatprep.mubr.bf16.mxu0 0
        %585 = vmatmul.mubr.bf16.gmra.mrb[0].mxu0 %v505
        %v586 = vpop.f32.mrb[0].mxu0
        %v587 = vadd.f32 0.0, %v586
        %v588 = vpop.f32.mrb[0].mxu0
        %v589 = vpop.f32.mrb[0].mxu0
        %v590 = vadd.f32 0.0, %v589
        %v591 = vpop.f32.mrb[0].mxu0
        %592 = vmatprep.mubr.bf16.mxu0 0
        %593 = vmatmul.mubr.bf16.gmra.mrb[0].mxu0 %v508
        %v594 = vpop.f32.mrb[0].mxu0
        %v595 = vadd.f32 0.0, %v594
        %v596 = vpop.f32.mrb[0].mxu0
        %v597 = vpop.f32.mrb[0].mxu0
        %v598 = vadd.f32 0.0, %v597
        %v599 = vpop.f32.mrb[0].mxu0
        %600 = vmatprep.mubr.bf16.mxu0 0
        %601 = vmatmul.mubr.bf16.gmra.mrb[0].mxu0 %v511
        %v602 = vpop.f32.mrb[0].mxu0
        %v603 = vadd.f32 0.0, %v602
        %v604 = vpop.f32.mrb[0].mxu0
        %v605 = vpop.f32.mrb[0].mxu0
        %v606 = vadd.f32 0.0, %v605
        %v607 = vpop.f32.mrb[0].mxu0
        %608 = vmatprep.mubr.bf16.mxu0 0
        %609 = vmatmul.mubr.bf16.gmra.mrb[0].mxu0 %v514
        %v610 = vpop.f32.mrb[0].mxu0
        %v611 = vadd.f32 0.0, %v610
        %v612 = vpop.f32.mrb[0].mxu0
        %v613 = vpop.f32.mrb[0].mxu0
        %v614 = vadd.f32 0.0, %v613
        %v615 = vpop.f32.mrb[0].mxu0
        %616 = vdwg.mxu0
        %v633 = vunpack.c.l.b16 %v248
        %v634 = vunpack.c.l.b16 %v249
        %v635 = vunpack.c.l.b16 %v251
        %v636 = vunpack.c.l.b16 %v252
        %v637 = vunpack.c.l.b16 %v254
        %v638 = vunpack.c.l.b16 %v255
        %v639 = vunpack.c.l.b16 %v257
        %v640 = vunpack.c.l.b16 %v258
        %v641 = vunpack.c.l.b16 %v260
        %v642 = vunpack.c.l.b16 %v261
        %v643 = vunpack.c.l.b16 %v263
        %v644 = vunpack.c.l.b16 %v264
        %v645 = vunpack.c.l.b16 %v266
        %v646 = vunpack.c.l.b16 %v267
        %v647 = vunpack.c.l.b16 %v269
        %v648 = vunpack.c.l.b16 %v270
        %v649 = vpack.c.b16 %v634, %v633
        %v650 = vpack.c.b16 %v636, %v635
        %v651 = vpack.c.b16 %v638, %v637
        %v652 = vpack.c.b16 %v640, %v639
        %v653 = vpack.c.b16 %v642, %v641
        %v654 = vpack.c.b16 %v644, %v643
        %v655 = vpack.c.b16 %v646, %v645
        %v656 = vpack.c.b16 %v648, %v647
        %v658 = vsel %vm491, %v649, 0
        %v661 = vsel %vm491, %v650, 0
        %v664 = vsel %vm491, %v651, 0
        %v667 = vsel %vm491, %v652, 0
        %v670 = vsel %vm491, %v653, 0
        %v673 = vsel %vm491, %v654, 0
        %v676 = vsel %vm491, %v655, 0
        %v679 = vsel %vm491, %v656, 0
        %v682 = vsel %vm516, %v236, 0
        %684 = vmatprep.subr.bf16.mxu0 0
        %685 = vmatpush1.bf16.msra.mxu0 %v682
        %686 = vmatprep.subr.bf16.mxu0 0
        %687 = vmatpush1.bf16.msra.mxu0 0
        %688 = vmatprep.subr.bf16.mxu0 0
        %689 = vmatpush1.bf16.msra.mxu0 0
        %690 = vmatprep.subr.bf16.mxu0 0
        %691 = vmatpush1.bf16.msra.mxu0 0
        %692 = vmatprep.subr.bf16.mxu0 0
        %693 = vmatpush1.bf16.msra.mxu0 0
        %694 = vmatprep.subr.bf16.mxu0 0
        %695 = vmatpush1.bf16.msra.mxu0 0
        %696 = vmatprep.subr.bf16.mxu0 0
        %697 = vmatpush1.bf16.msra.mxu0 0
        %698 = vmatprep.subr.bf16.mxu0 0
        %699 = vmatpush1.bf16.msra.mxu0 0
        %700 = vmatprep.subr.bf16.mxu0 0
        %701 = vmatpush1.bf16.msra.mxu0 0
        %702 = vmatprep.subr.bf16.mxu0 0
        %703 = vmatpush1.bf16.msra.mxu0 0
        %704 = vmatprep.subr.bf16.mxu0 0
        %705 = vmatpush1.bf16.msra.mxu0 0
        %706 = vmatprep.subr.bf16.mxu0 0
        %707 = vmatpush1.bf16.msra.mxu0 0
        %708 = vmatprep.subr.bf16.mxu0 0
        %709 = vmatpush1.bf16.msra.mxu0 0
        %710 = vmatprep.subr.bf16.mxu0 0
        %711 = vmatpush1.bf16.msra.mxu0 0
        %712 = vmatprep.subr.bf16.mxu0 0
        %713 = vmatpush1.bf16.msra.mxu0 0
        %714 = vmatprep.subr.bf16.mxu0 0
        %715 = vmatpush1.bf16.msra.mxu0 0
        %716 = vmatprep.mubr.bf16.mxu0 0
        %717 = vmatmul.mubr.bf16.gmra.mrb[0].mxu0 %v658
        %v718 = vpop.f32.mrb[0].mxu0
        %v719 = vadd.f32 %v555, %v718
        %v720 = vpop.f32.mrb[0].mxu0
        %v721 = vpop.f32.mrb[0].mxu0
        %v722 = vadd.f32 %v558, %v721
        %v723 = vpop.f32.mrb[0].mxu0
        %724 = vmatprep.mubr.bf16.mxu0 0
        %725 = vmatmul.mubr.bf16.gmra.mrb[0].mxu0 %v661
        %v726 = vpop.f32.mrb[0].mxu0
        %v727 = vadd.f32 %v563, %v726
        %v728 = vpop.f32.mrb[0].mxu0
        %v729 = vpop.f32.mrb[0].mxu0
        %v730 = vadd.f32 %v566, %v729
        %v731 = vpop.f32.mrb[0].mxu0
        %732 = vmatprep.mubr.bf16.mxu0 0
        %733 = vmatmul.mubr.bf16.gmra.mrb[0].mxu0 %v664
        %v734 = vpop.f32.mrb[0].mxu0
        %v735 = vadd.f32 %v571, %v734
        %v736 = vpop.f32.mrb[0].mxu0
        %v737 = vpop.f32.mrb[0].mxu0
        %v738 = vadd.f32 %v574, %v737
        %v739 = vpop.f32.mrb[0].mxu0
        %740 = vmatprep.mubr.bf16.mxu0 0
        %741 = vmatmul.mubr.bf16.gmra.mrb[0].mxu0 %v667
        %v742 = vpop.f32.mrb[0].mxu0
        %v743 = vadd.f32 %v579, %v742
        %v744 = vpop.f32.mrb[0].mxu0
        %v745 = vpop.f32.mrb[0].mxu0
        %v746 = vadd.f32 %v582, %v745
        %v747 = vpop.f32.mrb[0].mxu0
        %748 = vmatprep.mubr.bf16.mxu0 0
        %749 = vmatmul.mubr.bf16.gmra.mrb[0].mxu0 %v670
        %v750 = vpop.f32.mrb[0].mxu0
        %v751 = vadd.f32 %v587, %v750
        %v752 = vpop.f32.mrb[0].mxu0
        %v753 = vpop.f32.mrb[0].mxu0
        %v754 = vadd.f32 %v590, %v753
        %v755 = vpop.f32.mrb[0].mxu0
        %756 = vmatprep.mubr.bf16.mxu0 0
        %757 = vmatmul.mubr.bf16.gmra.mrb[0].mxu0 %v673
        %v758 = vpop.f32.mrb[0].mxu0
        %v759 = vadd.f32 %v595, %v758
        %v760 = vpop.f32.mrb[0].mxu0
        %v761 = vpop.f32.mrb[0].mxu0
        %v762 = vadd.f32 %v598, %v761
        %v763 = vpop.f32.mrb[0].mxu0
        %764 = vmatprep.mubr.bf16.mxu0 0
        %765 = vmatmul.mubr.bf16.gmra.mrb[0].mxu0 %v676
        %v766 = vpop.f32.mrb[0].mxu0
        %v767 = vadd.f32 %v603, %v766
        %v768 = vpop.f32.mrb[0].mxu0
        %v769 = vpop.f32.mrb[0].mxu0
        %v770 = vadd.f32 %v606, %v769
        %v771 = vpop.f32.mrb[0].mxu0
        %772 = vmatprep.mubr.bf16.mxu0 0
        %773 = vmatmul.mubr.bf16.gmra.mrb[0].mxu0 %v679
        %v774 = vpop.f32.mrb[0].mxu0
        %v775 = vadd.f32 %v611, %v774
        %v776 = vpop.f32.mrb[0].mxu0
        %v777 = vpop.f32.mrb[0].mxu0
        %v778 = vadd.f32 %v614, %v777
        %v779 = vpop.f32.mrb[0].mxu0
        %780 = vdwg.mxu0
        %vm789 = vcmask 1042432
        %vm790 = vcmask 1046532
        %vm791 = vmor %vm789, %vm790
        %v792 = vrot.slane %v248, 5
        %v793 = vrot.slane %v792, 4
        %v794 = vrot.slane %v249, 5
        %v795 = vsel %vm791, %v793, %v794
        %v796 = vrot.slane %v794, 4
        %v797 = vrot.slane %v250, 5
        %v798 = vsel %vm791, %v796, %v797
        %v799 = vrot.slane %v251, 5
        %v800 = vrot.slane %v799, 4
        %v801 = vrot.slane %v252, 5
        %v802 = vsel %vm791, %v800, %v801
        %v803 = vrot.slane %v801, 4
        %v804 = vrot.slane %v253, 5
        %v805 = vsel %vm791, %v803, %v804
        %v806 = vrot.slane %v254, 5
        %v807 = vrot.slane %v806, 4
        %v808 = vrot.slane %v255, 5
        %v809 = vsel %vm791, %v807, %v808
        %v810 = vrot.slane %v808, 4
        %v811 = vrot.slane %v256, 5
        %v812 = vsel %vm791, %v810, %v811
        %v813 = vrot.slane %v257, 5
        %v814 = vrot.slane %v813, 4
        %v815 = vrot.slane %v258, 5
        %v816 = vsel %vm791, %v814, %v815
        %v817 = vrot.slane %v815, 4
        %v818 = vrot.slane %v259, 5
        %v819 = vsel %vm791, %v817, %v818
        %v820 = vrot.slane %v260, 5
        %v821 = vrot.slane %v820, 4
        %v822 = vrot.slane %v261, 5
        %v823 = vsel %vm791, %v821, %v822
        %v824 = vrot.slane %v822, 4
        %v825 = vrot.slane %v262, 5
        %v826 = vsel %vm791, %v824, %v825
        %v827 = vrot.slane %v263, 5
        %v828 = vrot.slane %v827, 4
        %v829 = vrot.slane %v264, 5
        %v830 = vsel %vm791, %v828, %v829
        %v831 = vrot.slane %v829, 4
        %v832 = vrot.slane %v265, 5
        %v833 = vsel %vm791, %v831, %v832
        %v834 = vrot.slane %v266, 5
        %v835 = vrot.slane %v834, 4
        %v836 = vrot.slane %v267, 5
        %v837 = vsel %vm791, %v835, %v836
        %v838 = vrot.slane %v836, 4
        %v839 = vrot.slane %v268, 5
        %v840 = vsel %vm791, %v838, %v839
        %v841 = vrot.slane %v269, 5
        %v842 = vrot.slane %v841, 4
        %v843 = vrot.slane %v270, 5
        %v844 = vsel %vm791, %v842, %v843
        %v845 = vrot.slane %v843, 4
        %v846 = vrot.slane %v271, 5
        %v847 = vsel %vm791, %v845, %v846
        %v848 = vunpack.c.l.b16 %v795
        %v849 = vunpack.c.l.b16 %v798
        %v850 = vunpack.c.l.b16 %v802
        %v851 = vunpack.c.l.b16 %v805
        %v852 = vunpack.c.l.b16 %v809
        %v853 = vunpack.c.l.b16 %v812
        %v854 = vunpack.c.l.b16 %v816
        %v855 = vunpack.c.l.b16 %v819
        %v856 = vunpack.c.l.b16 %v823
        %v857 = vunpack.c.l.b16 %v826
        %v858 = vunpack.c.l.b16 %v830
        %v859 = vunpack.c.l.b16 %v833
        %v860 = vunpack.c.l.b16 %v837
        %v861 = vunpack.c.l.b16 %v840
        %v862 = vunpack.c.l.b16 %v844
        %v863 = vunpack.c.l.b16 %v847
        %v864 = vpack.c.b16 %v849, %v848
        %v865 = vpack.c.b16 %v851, %v850
        %v866 = vpack.c.b16 %v853, %v852
        %v867 = vpack.c.b16 %v855, %v854
        %v868 = vpack.c.b16 %v857, %v856
        %v869 = vpack.c.b16 %v859, %v858
        %v870 = vpack.c.b16 %v861, %v860
        %v871 = vpack.c.b16 %v863, %v862
        %v873 = vsel %vm491, %v864, 0
        %v876 = vsel %vm491, %v865, 0
        %v879 = vsel %vm491, %v866, 0
        %v882 = vsel %vm491, %v867, 0
        %v885 = vsel %vm491, %v868, 0
        %v888 = vsel %vm491, %v869, 0
        %v891 = vsel %vm491, %v870, 0
        %v894 = vsel %vm491, %v871, 0
        %v897 = vsel %vm516, %v238, 0
        %899 = vmatprep.subr.bf16.mxu0 0
        %900 = vmatpush1.bf16.msra.mxu0 %v897
        %901 = vmatprep.subr.bf16.mxu0 0
        %902 = vmatpush1.bf16.msra.mxu0 0
        %903 = vmatprep.subr.bf16.mxu0 0
        %904 = vmatpush1.bf16.msra.mxu0 0
        %905 = vmatprep.subr.bf16.mxu0 0
        %906 = vmatpush1.bf16.msra.mxu0 0
        %907 = vmatprep.subr.bf16.mxu0 0
        %908 = vmatpush1.bf16.msra.mxu0 0
        %909 = vmatprep.subr.bf16.mxu0 0
        %910 = vmatpush1.bf16.msra.mxu0 0
        %911 = vmatprep.subr.bf16.mxu0 0
        %912 = vmatpush1.bf16.msra.mxu0 0
        %913 = vmatprep.subr.bf16.mxu0 0
        %914 = vmatpush1.bf16.msra.mxu0 0
        %915 = vmatprep.subr.bf16.mxu0 0
        %916 = vmatpush1.bf16.msra.mxu0 0
        %917 = vmatprep.subr.bf16.mxu0 0
        %918 = vmatpush1.bf16.msra.mxu0 0
        %919 = vmatprep.subr.bf16.mxu0 0
        %920 = vmatpush1.bf16.msra.mxu0 0
        %921 = vmatprep.subr.bf16.mxu0 0
        %922 = vmatpush1.bf16.msra.mxu0 0
        %923 = vmatprep.subr.bf16.mxu0 0
        %924 = vmatpush1.bf16.msra.mxu0 0
        %925 = vmatprep.subr.bf16.mxu0 0
        %926 = vmatpush1.bf16.msra.mxu0 0
        %927 = vmatprep.subr.bf16.mxu0 0
        %928 = vmatpush1.bf16.msra.mxu0 0
        %929 = vmatprep.subr.bf16.mxu0 0
        %930 = vmatpush1.bf16.msra.mxu0 0
        %931 = vmatprep.mubr.bf16.mxu0 0
        %932 = vmatmul.mubr.bf16.gmra.mrb[0].mxu0 %v873
        %v933 = vpop.f32.mrb[0].mxu0
        %v934 = vadd.f32 0.0, %v933
        %v935 = vpop.f32.mrb[0].mxu0
        %v936 = vpop.f32.mrb[0].mxu0
        %v937 = vadd.f32 0.0, %v936
        %v938 = vpop.f32.mrb[0].mxu0
        %939 = vmatprep.mubr.bf16.mxu0 0
        %940 = vmatmul.mubr.bf16.gmra.mrb[0].mxu0 %v876
        %v941 = vpop.f32.mrb[0].mxu0
        %v942 = vadd.f32 0.0, %v941
        %v943 = vpop.f32.mrb[0].mxu0
        %v944 = vpop.f32.mrb[0].mxu0
        %v945 = vadd.f32 0.0, %v944
        %v946 = vpop.f32.mrb[0].mxu0
        %947 = vmatprep.mubr.bf16.mxu0 0
        %948 = vmatmul.mubr.bf16.gmra.mrb[0].mxu0 %v879
        %v949 = vpop.f32.mrb[0].mxu0
        %v950 = vadd.f32 0.0, %v949
        %v951 = vpop.f32.mrb[0].mxu0
        %v952 = vpop.f32.mrb[0].mxu0
        %v953 = vadd.f32 0.0, %v952
        %v954 = vpop.f32.mrb[0].mxu0
        %955 = vmatprep.mubr.bf16.mxu0 0
        %956 = vmatmul.mubr.bf16.gmra.mrb[0].mxu0 %v882
        %v957 = vpop.f32.mrb[0].mxu0
        %v958 = vadd.f32 0.0, %v957
        %v959 = vpop.f32.mrb[0].mxu0
        %v960 = vpop.f32.mrb[0].mxu0
        %v961 = vadd.f32 0.0, %v960
        %v962 = vpop.f32.mrb[0].mxu0
        %963 = vmatprep.mubr.bf16.mxu0 0
        %964 = vmatmul.mubr.bf16.gmra.mrb[0].mxu0 %v885
        %v965 = vpop.f32.mrb[0].mxu0
        %v966 = vadd.f32 0.0, %v965
        %v967 = vpop.f32.mrb[0].mxu0
        %v968 = vpop.f32.mrb[0].mxu0
        %v969 = vadd.f32 0.0, %v968
        %v970 = vpop.f32.mrb[0].mxu0
        %971 = vmatprep.mubr.bf16.mxu0 0
        %972 = vmatmul.mubr.bf16.gmra.mrb[0].mxu0 %v888
        %v973 = vpop.f32.mrb[0].mxu0
        %v974 = vadd.f32 0.0, %v973
        %v975 = vpop.f32.mrb[0].mxu0
        %v976 = vpop.f32.mrb[0].mxu0
        %v977 = vadd.f32 0.0, %v976
        %v978 = vpop.f32.mrb[0].mxu0
        %979 = vmatprep.mubr.bf16.mxu0 0
        %980 = vmatmul.mubr.bf16.gmra.mrb[0].mxu0 %v891
        %v981 = vpop.f32.mrb[0].mxu0
        %v982 = vadd.f32 0.0, %v981
        %v983 = vpop.f32.mrb[0].mxu0
        %v984 = vpop.f32.mrb[0].mxu0
        %v985 = vadd.f32 0.0, %v984
        %v986 = vpop.f32.mrb[0].mxu0
        %987 = vmatprep.mubr.bf16.mxu0 0
        %988 = vmatmul.mubr.bf16.gmra.mrb[0].mxu0 %v894
        %v989 = vpop.f32.mrb[0].mxu0
        %v990 = vadd.f32 0.0, %v989
        %v991 = vpop.f32.mrb[0].mxu0
        %v992 = vpop.f32.mrb[0].mxu0
        %v993 = vadd.f32 0.0, %v992
        %v994 = vpop.f32.mrb[0].mxu0
        %995 = vdwg.mxu0
        %v996 = vadd.f32 %v719, %v934
        %v997 = vadd.f32 %v722, %v937
        %v998 = vadd.f32 %v727, %v942
        %v999 = vadd.f32 %v730, %v945
        %v1000 = vadd.f32 %v735, %v950
        %v1001 = vadd.f32 %v738, %v953
        %v1002 = vadd.f32 %v743, %v958
        %v1003 = vadd.f32 %v746, %v961
        %v1004 = vadd.f32 %v751, %v966
        %v1005 = vadd.f32 %v754, %v969
        %v1006 = vadd.f32 %v759, %v974
        %v1007 = vadd.f32 %v762, %v977
        %v1008 = vadd.f32 %v767, %v982
        %v1009 = vadd.f32 %v770, %v985
        %v1010 = vadd.f32 %v775, %v990
        %v1011 = vadd.f32 %v778, %v993
        %s1012 = sadd.s32 %s235, 1
        %s1013 = smul.u32 %s1012, 3
        %s1014 = smul.addr %s1013, 4
        %s1015 = scalar_lea.vmem %s222, %s1014
        %v1016 = vld [vmem:[%s1015] sm:$0xf]
        %v1017 = vld [vmem:[%s1015 + $0x4] sm:$0xf]
        %v1018 = vld [vmem:[%s1015 + $0x8] sm:$0x1]
        %v1019 = vld [vmem:[%s1015 + $0xc] sm:$0xf]
        %v1020 = vld [vmem:[%s1015 + $0x10] sm:$0xf]
        %v1021 = vld [vmem:[%s1015 + $0x14] sm:$0x1]
        %v1022 = vld [vmem:[%s1015 + $0x18] sm:$0xf]
        %v1023 = vld [vmem:[%s1015 + $0x1c] sm:$0xf]
        %v1024 = vld [vmem:[%s1015 + $0x20] sm:$0x1]
        %v1025 = vld [vmem:[%s1015 + $0x24] sm:$0xf]
        %v1026 = vld [vmem:[%s1015 + $0x28] sm:$0xf]
        %v1027 = vld [vmem:[%s1015 + $0x2c] sm:$0x1]
        %v1028 = vld [vmem:[%s1015 + $0x30] sm:$0xf]
        %v1029 = vld [vmem:[%s1015 + $0x34] sm:$0xf]
        %v1030 = vld [vmem:[%s1015 + $0x38] sm:$0x1]
        %v1031 = vld [vmem:[%s1015 + $0x3c] sm:$0xf]
        %v1032 = vld [vmem:[%s1015 + $0x40] sm:$0xf]
        %v1033 = vld [vmem:[%s1015 + $0x44] sm:$0x1]
        %v1034 = vld [vmem:[%s1015 + $0x48] sm:$0xf]
        %v1035 = vld [vmem:[%s1015 + $0x4c] sm:$0xf]
        %v1036 = vld [vmem:[%s1015 + $0x50] sm:$0x1]
        %v1037 = vld [vmem:[%s1015 + $0x54] sm:$0xf]
        %v1038 = vld [vmem:[%s1015 + $0x58] sm:$0xf]
        %v1039 = vld [vmem:[%s1015 + $0x5c] sm:$0x1]
        %v1056 = vunpack.c.l.b16 %v1016
        %v1057 = vunpack.c.l.b16 %v1017
        %v1058 = vunpack.c.l.b16 %v1019
        %v1059 = vunpack.c.l.b16 %v1020
        %v1060 = vunpack.c.l.b16 %v1022
        %v1061 = vunpack.c.l.b16 %v1023
        %v1062 = vunpack.c.l.b16 %v1025
        %v1063 = vunpack.c.l.b16 %v1026
        %v1064 = vunpack.c.l.b16 %v1028
        %v1065 = vunpack.c.l.b16 %v1029
        %v1066 = vunpack.c.l.b16 %v1031
        %v1067 = vunpack.c.l.b16 %v1032
        %v1068 = vunpack.c.l.b16 %v1034
        %v1069 = vunpack.c.l.b16 %v1035
        %v1070 = vunpack.c.l.b16 %v1037
        %v1071 = vunpack.c.l.b16 %v1038
        %v1072 = vpack.c.b16 %v1057, %v1056
        %v1073 = vpack.c.b16 %v1059, %v1058
        %v1074 = vpack.c.b16 %v1061, %v1060
        %v1075 = vpack.c.b16 %v1063, %v1062
        %v1076 = vpack.c.b16 %v1065, %v1064
        %v1077 = vpack.c.b16 %v1067, %v1066
        %v1078 = vpack.c.b16 %v1069, %v1068
        %v1079 = vpack.c.b16 %v1071, %v1070
        %v1081 = vsel %vm491, %v1072, 0
        %v1084 = vsel %vm491, %v1073, 0
        %v1087 = vsel %vm491, %v1074, 0
        %v1090 = vsel %vm491, %v1075, 0
        %v1093 = vsel %vm491, %v1076, 0
        %v1096 = vsel %vm491, %v1077, 0
        %v1099 = vsel %vm491, %v1078, 0
        %v1102 = vsel %vm491, %v1079, 0
        %v1105 = vsel %vm516, %v239, 0
        %1107 = vmatprep.subr.bf16.mxu0 0
        %1108 = vmatpush1.bf16.msra.mxu0 %v1105
        %1109 = vmatprep.subr.bf16.mxu0 0
        %1110 = vmatpush1.bf16.msra.mxu0 0
        %1111 = vmatprep.subr.bf16.mxu0 0
        %1112 = vmatpush1.bf16.msra.mxu0 0
        %1113 = vmatprep.subr.bf16.mxu0 0
        %1114 = vmatpush1.bf16.msra.mxu0 0
        %1115 = vmatprep.subr.bf16.mxu0 0
        %1116 = vmatpush1.bf16.msra.mxu0 0
        %1117 = vmatprep.subr.bf16.mxu0 0
        %1118 = vmatpush1.bf16.msra.mxu0 0
        %1119 = vmatprep.subr.bf16.mxu0 0
        %1120 = vmatpush1.bf16.msra.mxu0 0
        %1121 = vmatprep.subr.bf16.mxu0 0
        %1122 = vmatpush1.bf16.msra.mxu0 0
        %1123 = vmatprep.subr.bf16.mxu0 0
        %1124 = vmatpush1.bf16.msra.mxu0 0
        %1125 = vmatprep.subr.bf16.mxu0 0
        %1126 = vmatpush1.bf16.msra.mxu0 0
        %1127 = vmatprep.subr.bf16.mxu0 0
        %1128 = vmatpush1.bf16.msra.mxu0 0
        %1129 = vmatprep.subr.bf16.mxu0 0
        %1130 = vmatpush1.bf16.msra.mxu0 0
        %1131 = vmatprep.subr.bf16.mxu0 0
        %1132 = vmatpush1.bf16.msra.mxu0 0
        %1133 = vmatprep.subr.bf16.mxu0 0
        %1134 = vmatpush1.bf16.msra.mxu0 0
        %1135 = vmatprep.subr.bf16.mxu0 0
        %1136 = vmatpush1.bf16.msra.mxu0 0
        %1137 = vmatprep.subr.bf16.mxu0 0
        %1138 = vmatpush1.bf16.msra.mxu0 0
        %1139 = vmatprep.mubr.bf16.mxu0 0
        %1140 = vmatmul.mubr.bf16.gmra.mrb[0].mxu0 %v1081
        %v1141 = vpop.f32.mrb[0].mxu0
        %v1142 = vadd.f32 0.0, %v1141
        %v1143 = vpop.f32.mrb[0].mxu0
        %v1144 = vpop.f32.mrb[0].mxu0
        %v1145 = vadd.f32 0.0, %v1144
        %v1146 = vpop.f32.mrb[0].mxu0
        %1147 = vmatprep.mubr.bf16.mxu0 0
        %1148 = vmatmul.mubr.bf16.gmra.mrb[0].mxu0 %v1084
        %v1149 = vpop.f32.mrb[0].mxu0
        %v1150 = vadd.f32 0.0, %v1149
        %v1151 = vpop.f32.mrb[0].mxu0
        %v1152 = vpop.f32.mrb[0].mxu0
        %v1153 = vadd.f32 0.0, %v1152
        %v1154 = vpop.f32.mrb[0].mxu0
        %1155 = vmatprep.mubr.bf16.mxu0 0
        %1156 = vmatmul.mubr.bf16.gmra.mrb[0].mxu0 %v1087
        %v1157 = vpop.f32.mrb[0].mxu0
        %v1158 = vadd.f32 0.0, %v1157
        %v1159 = vpop.f32.mrb[0].mxu0
        %v1160 = vpop.f32.mrb[0].mxu0
        %v1161 = vadd.f32 0.0, %v1160
        %v1162 = vpop.f32.mrb[0].mxu0
        %1163 = vmatprep.mubr.bf16.mxu0 0
        %1164 = vmatmul.mubr.bf16.gmra.mrb[0].mxu0 %v1090
        %v1165 = vpop.f32.mrb[0].mxu0
        %v1166 = vadd.f32 0.0, %v1165
        %v1167 = vpop.f32.mrb[0].mxu0
        %v1168 = vpop.f32.mrb[0].mxu0
        %v1169 = vadd.f32 0.0, %v1168
        %v1170 = vpop.f32.mrb[0].mxu0
        %1171 = vmatprep.mubr.bf16.mxu0 0
        %1172 = vmatmul.mubr.bf16.gmra.mrb[0].mxu0 %v1093
        %v1173 = vpop.f32.mrb[0].mxu0
        %v1174 = vadd.f32 0.0, %v1173
        %v1175 = vpop.f32.mrb[0].mxu0
        %v1176 = vpop.f32.mrb[0].mxu0
        %v1177 = vadd.f32 0.0, %v1176
        %v1178 = vpop.f32.mrb[0].mxu0
        %1179 = vmatprep.mubr.bf16.mxu0 0
        %1180 = vmatmul.mubr.bf16.gmra.mrb[0].mxu0 %v1096
        %v1181 = vpop.f32.mrb[0].mxu0
        %v1182 = vadd.f32 0.0, %v1181
        %v1183 = vpop.f32.mrb[0].mxu0
        %v1184 = vpop.f32.mrb[0].mxu0
        %v1185 = vadd.f32 0.0, %v1184
        %v1186 = vpop.f32.mrb[0].mxu0
        %1187 = vmatprep.mubr.bf16.mxu0 0
        %1188 = vmatmul.mubr.bf16.gmra.mrb[0].mxu0 %v1099
        %v1189 = vpop.f32.mrb[0].mxu0
        %v1190 = vadd.f32 0.0, %v1189
        %v1191 = vpop.f32.mrb[0].mxu0
        %v1192 = vpop.f32.mrb[0].mxu0
        %v1193 = vadd.f32 0.0, %v1192
        %v1194 = vpop.f32.mrb[0].mxu0
        %1195 = vmatprep.mubr.bf16.mxu0 0
        %1196 = vmatmul.mubr.bf16.gmra.mrb[0].mxu0 %v1102
        %v1197 = vpop.f32.mrb[0].mxu0
        %v1198 = vadd.f32 0.0, %v1197
        %v1199 = vpop.f32.mrb[0].mxu0
        %v1200 = vpop.f32.mrb[0].mxu0
        %v1201 = vadd.f32 0.0, %v1200
        %v1202 = vpop.f32.mrb[0].mxu0
        %1203 = vdwg.mxu0
        %v1204 = vadd.f32 %v996, %v1142
        %v1205 = vadd.f32 %v997, %v1145
        %v1206 = vadd.f32 %v998, %v1150
        %v1207 = vadd.f32 %v999, %v1153
        %v1208 = vadd.f32 %v1000, %v1158
        %v1209 = vadd.f32 %v1001, %v1161
        %v1210 = vadd.f32 %v1002, %v1166
        %v1211 = vadd.f32 %v1003, %v1169
        %v1212 = vadd.f32 %v1004, %v1174
        %v1213 = vadd.f32 %v1005, %v1177
        %v1214 = vadd.f32 %v1006, %v1182
        %v1215 = vadd.f32 %v1007, %v1185
        %v1216 = vadd.f32 %v1008, %v1190
        %v1217 = vadd.f32 %v1009, %v1193
        %v1218 = vadd.f32 %v1010, %v1198
        %v1219 = vadd.f32 %v1011, %v1201
        %v1221 = vshrl.u32 %v1016, 16
        %v1223 = vrot.slane %v1221, 4
        %v1224 = vshll.u32 %v1016, 16
        %v1226 = vrot.slane %v1224, 5
        %v1227 = vor.u32 %v1223, %v1226
        %v1228 = vrot.slane %v1227, 4
        %v1230 = vshll.u32 %v1017, 16
        %v1232 = vrot.slane %v1230, 5
        %v1233 = vsel %vm274, %v1228, %v1232
        %v1234 = vshrl.u32 %v1017, 16
        %v1236 = vrot.slane %v1234, 4
        %v1237 = vor.u32 %v1236, %v1232
        %v1238 = vrot.slane %v1237, 4
        %v1240 = vshll.u32 %v1018, 16
        %v1242 = vrot.slane %v1240, 5
        %v1243 = vsel %vm274, %v1238, %v1242
        %v1245 = vshrl.u32 %v1019, 16
        %v1247 = vrot.slane %v1245, 4
        %v1248 = vshll.u32 %v1019, 16
        %v1250 = vrot.slane %v1248, 5
        %v1251 = vor.u32 %v1247, %v1250
        %v1252 = vrot.slane %v1251, 4
        %v1254 = vshll.u32 %v1020, 16
        %v1256 = vrot.slane %v1254, 5
        %v1257 = vsel %vm274, %v1252, %v1256
        %v1258 = vshrl.u32 %v1020, 16
        %v1260 = vrot.slane %v1258, 4
        %v1261 = vor.u32 %v1260, %v1256
        %v1262 = vrot.slane %v1261, 4
        %v1264 = vshll.u32 %v1021, 16
        %v1266 = vrot.slane %v1264, 5
        %v1267 = vsel %vm274, %v1262, %v1266
        %v1269 = vshrl.u32 %v1022, 16
        %v1271 = vrot.slane %v1269, 4
        %v1272 = vshll.u32 %v1022, 16
        %v1274 = vrot.slane %v1272, 5
        %v1275 = vor.u32 %v1271, %v1274
        %v1276 = vrot.slane %v1275, 4
        %v1278 = vshll.u32 %v1023, 16
        %v1280 = vrot.slane %v1278, 5
        %v1281 = vsel %vm274, %v1276, %v1280
        %v1282 = vshrl.u32 %v1023, 16
        %v1284 = vrot.slane %v1282, 4
        %v1285 = vor.u32 %v1284, %v1280
        %v1286 = vrot.slane %v1285, 4
        %v1288 = vshll.u32 %v1024, 16
        %v1290 = vrot.slane %v1288, 5
        %v1291 = vsel %vm274, %v1286, %v1290
        %v1293 = vshrl.u32 %v1025, 16
        %v1295 = vrot.slane %v1293, 4
        %v1296 = vshll.u32 %v1025, 16
        %v1298 = vrot.slane %v1296, 5
        %v1299 = vor.u32 %v1295, %v1298
        %v1300 = vrot.slane %v1299, 4
        %v1302 = vshll.u32 %v1026, 16
        %v1304 = vrot.slane %v1302, 5
        %v1305 = vsel %vm274, %v1300, %v1304
        %v1306 = vshrl.u32 %v1026, 16
        %v1308 = vrot.slane %v1306, 4
        %v1309 = vor.u32 %v1308, %v1304
        %v1310 = vrot.slane %v1309, 4
        %v1312 = vshll.u32 %v1027, 16
        %v1314 = vrot.slane %v1312, 5
        %v1315 = vsel %vm274, %v1310, %v1314
        %v1317 = vshrl.u32 %v1028, 16
        %v1319 = vrot.slane %v1317, 4
        %v1320 = vshll.u32 %v1028, 16
        %v1322 = vrot.slane %v1320, 5
        %v1323 = vor.u32 %v1319, %v1322
        %v1324 = vrot.slane %v1323, 4
        %v1326 = vshll.u32 %v1029, 16
        %v1328 = vrot.slane %v1326, 5
        %v1329 = vsel %vm274, %v1324, %v1328
        %v1330 = vshrl.u32 %v1029, 16
        %v1332 = vrot.slane %v1330, 4
        %v1333 = vor.u32 %v1332, %v1328
        %v1334 = vrot.slane %v1333, 4
        %v1336 = vshll.u32 %v1030, 16
        %v1338 = vrot.slane %v1336, 5
        %v1339 = vsel %vm274, %v1334, %v1338
        %v1341 = vshrl.u32 %v1031, 16
        %v1343 = vrot.slane %v1341, 4
        %v1344 = vshll.u32 %v1031, 16
        %v1346 = vrot.slane %v1344, 5
        %v1347 = vor.u32 %v1343, %v1346
        %v1348 = vrot.slane %v1347, 4
        %v1350 = vshll.u32 %v1032, 16
        %v1352 = vrot.slane %v1350, 5
        %v1353 = vsel %vm274, %v1348, %v1352
        %v1354 = vshrl.u32 %v1032, 16
        %v1356 = vrot.slane %v1354, 4
        %v1357 = vor.u32 %v1356, %v1352
        %v1358 = vrot.slane %v1357, 4
        %v1360 = vshll.u32 %v1033, 16
        %v1362 = vrot.slane %v1360, 5
        %v1363 = vsel %vm274, %v1358, %v1362
        %v1365 = vshrl.u32 %v1034, 16
        %v1367 = vrot.slane %v1365, 4
        %v1368 = vshll.u32 %v1034, 16
        %v1370 = vrot.slane %v1368, 5
        %v1371 = vor.u32 %v1367, %v1370
        %v1372 = vrot.slane %v1371, 4
        %v1374 = vshll.u32 %v1035, 16
        %v1376 = vrot.slane %v1374, 5
        %v1377 = vsel %vm274, %v1372, %v1376
        %v1378 = vshrl.u32 %v1035, 16
        %v1380 = vrot.slane %v1378, 4
        %v1381 = vor.u32 %v1380, %v1376
        %v1382 = vrot.slane %v1381, 4
        %v1384 = vshll.u32 %v1036, 16
        %v1386 = vrot.slane %v1384, 5
        %v1387 = vsel %vm274, %v1382, %v1386
        %v1389 = vshrl.u32 %v1037, 16
        %v1391 = vrot.slane %v1389, 4
        %v1392 = vshll.u32 %v1037, 16
        %v1394 = vrot.slane %v1392, 5
        %v1395 = vor.u32 %v1391, %v1394
        %v1396 = vrot.slane %v1395, 4
        %v1398 = vshll.u32 %v1038, 16
        %v1400 = vrot.slane %v1398, 5
        %v1401 = vsel %vm274, %v1396, %v1400
        %v1402 = vshrl.u32 %v1038, 16
        %v1404 = vrot.slane %v1402, 4
        %v1405 = vor.u32 %v1404, %v1400
        %v1406 = vrot.slane %v1405, 4
        %v1408 = vshll.u32 %v1039, 16
        %v1410 = vrot.slane %v1408, 5
        %v1411 = vsel %vm274, %v1406, %v1410
        %v1412 = vunpack.c.l.b16 %v1233
        %v1413 = vunpack.c.l.b16 %v1243
        %v1414 = vunpack.c.l.b16 %v1257
        %v1415 = vunpack.c.l.b16 %v1267
        %v1416 = vunpack.c.l.b16 %v1281
        %v1417 = vunpack.c.l.b16 %v1291
        %v1418 = vunpack.c.l.b16 %v1305
        %v1419 = vunpack.c.l.b16 %v1315
        %v1420 = vunpack.c.l.b16 %v1329
        %v1421 = vunpack.c.l.b16 %v1339
        %v1422 = vunpack.c.l.b16 %v1353
        %v1423 = vunpack.c.l.b16 %v1363
        %v1424 = vunpack.c.l.b16 %v1377
        %v1425 = vunpack.c.l.b16 %v1387
        %v1426 = vunpack.c.l.b16 %v1401
        %v1427 = vunpack.c.l.b16 %v1411
        %v1428 = vpack.c.b16 %v1413, %v1412
        %v1429 = vpack.c.b16 %v1415, %v1414
        %v1430 = vpack.c.b16 %v1417, %v1416
        %v1431 = vpack.c.b16 %v1419, %v1418
        %v1432 = vpack.c.b16 %v1421, %v1420
        %v1433 = vpack.c.b16 %v1423, %v1422
        %v1434 = vpack.c.b16 %v1425, %v1424
        %v1435 = vpack.c.b16 %v1427, %v1426
        %v1437 = vsel %vm491, %v1428, 0
        %v1440 = vsel %vm491, %v1429, 0
        %v1443 = vsel %vm491, %v1430, 0
        %v1446 = vsel %vm491, %v1431, 0
        %v1449 = vsel %vm491, %v1432, 0
        %v1452 = vsel %vm491, %v1433, 0
        %v1455 = vsel %vm491, %v1434, 0
        %v1458 = vsel %vm491, %v1435, 0
        %v1461 = vsel %vm516, %v240, 0
        %1463 = vmatprep.subr.bf16.mxu0 0
        %1464 = vmatpush1.bf16.msra.mxu0 %v1461
        %1465 = vmatprep.subr.bf16.mxu0 0
        %1466 = vmatpush1.bf16.msra.mxu0 0
        %1467 = vmatprep.subr.bf16.mxu0 0
        %1468 = vmatpush1.bf16.msra.mxu0 0
        %1469 = vmatprep.subr.bf16.mxu0 0
        %1470 = vmatpush1.bf16.msra.mxu0 0
        %1471 = vmatprep.subr.bf16.mxu0 0
        %1472 = vmatpush1.bf16.msra.mxu0 0
        %1473 = vmatprep.subr.bf16.mxu0 0
        %1474 = vmatpush1.bf16.msra.mxu0 0
        %1475 = vmatprep.subr.bf16.mxu0 0
        %1476 = vmatpush1.bf16.msra.mxu0 0
        %1477 = vmatprep.subr.bf16.mxu0 0
        %1478 = vmatpush1.bf16.msra.mxu0 0
        %1479 = vmatprep.subr.bf16.mxu0 0
        %1480 = vmatpush1.bf16.msra.mxu0 0
        %1481 = vmatprep.subr.bf16.mxu0 0
        %1482 = vmatpush1.bf16.msra.mxu0 0
        %1483 = vmatprep.subr.bf16.mxu0 0
        %1484 = vmatpush1.bf16.msra.mxu0 0
        %1485 = vmatprep.subr.bf16.mxu0 0
        %1486 = vmatpush1.bf16.msra.mxu0 0
        %1487 = vmatprep.subr.bf16.mxu0 0
        %1488 = vmatpush1.bf16.msra.mxu0 0
        %1489 = vmatprep.subr.bf16.mxu0 0
        %1490 = vmatpush1.bf16.msra.mxu0 0
        %1491 = vmatprep.subr.bf16.mxu0 0
        %1492 = vmatpush1.bf16.msra.mxu0 0
        %1493 = vmatprep.subr.bf16.mxu0 0
        %1494 = vmatpush1.bf16.msra.mxu0 0
        %1495 = vmatprep.mubr.bf16.mxu0 0
        %1496 = vmatmul.mubr.bf16.gmra.mrb[0].mxu0 %v1437
        %v1497 = vpop.f32.mrb[0].mxu0
        %v1498 = vadd.f32 0.0, %v1497
        %v1499 = vpop.f32.mrb[0].mxu0
        %v1500 = vpop.f32.mrb[0].mxu0
        %v1501 = vadd.f32 0.0, %v1500
        %v1502 = vpop.f32.mrb[0].mxu0
        %1503 = vmatprep.mubr.bf16.mxu0 0
        %1504 = vmatmul.mubr.bf16.gmra.mrb[0].mxu0 %v1440
        %v1505 = vpop.f32.mrb[0].mxu0
        %v1506 = vadd.f32 0.0, %v1505
        %v1507 = vpop.f32.mrb[0].mxu0
        %v1508 = vpop.f32.mrb[0].mxu0
        %v1509 = vadd.f32 0.0, %v1508
        %v1510 = vpop.f32.mrb[0].mxu0
        %1511 = vmatprep.mubr.bf16.mxu0 0
        %1512 = vmatmul.mubr.bf16.gmra.mrb[0].mxu0 %v1443
        %v1513 = vpop.f32.mrb[0].mxu0
        %v1514 = vadd.f32 0.0, %v1513
        %v1515 = vpop.f32.mrb[0].mxu0
        %v1516 = vpop.f32.mrb[0].mxu0
        %v1517 = vadd.f32 0.0, %v1516
        %v1518 = vpop.f32.mrb[0].mxu0
        %1519 = vmatprep.mubr.bf16.mxu0 0
        %1520 = vmatmul.mubr.bf16.gmra.mrb[0].mxu0 %v1446
        %v1521 = vpop.f32.mrb[0].mxu0
        %v1522 = vadd.f32 0.0, %v1521
        %v1523 = vpop.f32.mrb[0].mxu0
        %v1524 = vpop.f32.mrb[0].mxu0
        %v1525 = vadd.f32 0.0, %v1524
        %v1526 = vpop.f32.mrb[0].mxu0
        %1527 = vmatprep.mubr.bf16.mxu0 0
        %1528 = vmatmul.mubr.bf16.gmra.mrb[0].mxu0 %v1449
        %v1529 = vpop.f32.mrb[0].mxu0
        %v1530 = vadd.f32 0.0, %v1529
        %v1531 = vpop.f32.mrb[0].mxu0
        %v1532 = vpop.f32.mrb[0].mxu0
        %v1533 = vadd.f32 0.0, %v1532
        %v1534 = vpop.f32.mrb[0].mxu0
        %1535 = vmatprep.mubr.bf16.mxu0 0
        %1536 = vmatmul.mubr.bf16.gmra.mrb[0].mxu0 %v1452
        %v1537 = vpop.f32.mrb[0].mxu0
        %v1538 = vadd.f32 0.0, %v1537
        %v1539 = vpop.f32.mrb[0].mxu0
        %v1540 = vpop.f32.mrb[0].mxu0
        %v1541 = vadd.f32 0.0, %v1540
        %v1542 = vpop.f32.mrb[0].mxu0
        %1543 = vmatprep.mubr.bf16.mxu0 0
        %1544 = vmatmul.mubr.bf16.gmra.mrb[0].mxu0 %v1455
        %v1545 = vpop.f32.mrb[0].mxu0
        %v1546 = vadd.f32 0.0, %v1545
        %v1547 = vpop.f32.mrb[0].mxu0
        %v1548 = vpop.f32.mrb[0].mxu0
        %v1549 = vadd.f32 0.0, %v1548
        %v1550 = vpop.f32.mrb[0].mxu0
        %1551 = vmatprep.mubr.bf16.mxu0 0
        %1552 = vmatmul.mubr.bf16.gmra.mrb[0].mxu0 %v1458
        %v1553 = vpop.f32.mrb[0].mxu0
        %v1554 = vadd.f32 0.0, %v1553
        %v1555 = vpop.f32.mrb[0].mxu0
        %v1556 = vpop.f32.mrb[0].mxu0
        %v1557 = vadd.f32 0.0, %v1556
        %v1558 = vpop.f32.mrb[0].mxu0
        %1559 = vdwg.mxu0
        %v1560 = vadd.f32 %v1204, %v1498
        %v1561 = vadd.f32 %v1205, %v1501
        %v1562 = vadd.f32 %v1206, %v1506
        %v1563 = vadd.f32 %v1207, %v1509
        %v1564 = vadd.f32 %v1208, %v1514
        %v1565 = vadd.f32 %v1209, %v1517
        %v1566 = vadd.f32 %v1210, %v1522
        %v1567 = vadd.f32 %v1211, %v1525
        %v1568 = vadd.f32 %v1212, %v1530
        %v1569 = vadd.f32 %v1213, %v1533
        %v1570 = vadd.f32 %v1214, %v1538
        %v1571 = vadd.f32 %v1215, %v1541
        %v1572 = vadd.f32 %v1216, %v1546
        %v1573 = vadd.f32 %v1217, %v1549
        %v1574 = vadd.f32 %v1218, %v1554
        %v1575 = vadd.f32 %v1219, %v1557
        %v1584 = vrot.slane %v1016, 5
        %v1585 = vrot.slane %v1584, 4
        %v1586 = vrot.slane %v1017, 5
        %v1587 = vsel %vm791, %v1585, %v1586
        %v1588 = vrot.slane %v1586, 4
        %v1589 = vrot.slane %v1018, 5
        %v1590 = vsel %vm791, %v1588, %v1589
        %v1591 = vrot.slane %v1019, 5
        %v1592 = vrot.slane %v1591, 4
        %v1593 = vrot.slane %v1020, 5
        %v1594 = vsel %vm791, %v1592, %v1593
        %v1595 = vrot.slane %v1593, 4
        %v1596 = vrot.slane %v1021, 5
        %v1597 = vsel %vm791, %v1595, %v1596
        %v1598 = vrot.slane %v1022, 5
        %v1599 = vrot.slane %v1598, 4
        %v1600 = vrot.slane %v1023, 5
        %v1601 = vsel %vm791, %v1599, %v1600
        %v1602 = vrot.slane %v1600, 4
        %v1603 = vrot.slane %v1024, 5
        %v1604 = vsel %vm791, %v1602, %v1603
        %v1605 = vrot.slane %v1025, 5
        %v1606 = vrot.slane %v1605, 4
        %v1607 = vrot.slane %v1026, 5
        %v1608 = vsel %vm791, %v1606, %v1607
        %v1609 = vrot.slane %v1607, 4
        %v1610 = vrot.slane %v1027, 5
        %v1611 = vsel %vm791, %v1609, %v1610
        %v1612 = vrot.slane %v1028, 5
        %v1613 = vrot.slane %v1612, 4
        %v1614 = vrot.slane %v1029, 5
        %v1615 = vsel %vm791, %v1613, %v1614
        %v1616 = vrot.slane %v1614, 4
        %v1617 = vrot.slane %v1030, 5
        %v1618 = vsel %vm791, %v1616, %v1617
        %v1619 = vrot.slane %v1031, 5
        %v1620 = vrot.slane %v1619, 4
        %v1621 = vrot.slane %v1032, 5
        %v1622 = vsel %vm791, %v1620, %v1621
        %v1623 = vrot.slane %v1621, 4
        %v1624 = vrot.slane %v1033, 5
        %v1625 = vsel %vm791, %v1623, %v1624
        %v1626 = vrot.slane %v1034, 5
        %v1627 = vrot.slane %v1626, 4
        %v1628 = vrot.slane %v1035, 5
        %v1629 = vsel %vm791, %v1627, %v1628
        %v1630 = vrot.slane %v1628, 4
        %v1631 = vrot.slane %v1036, 5
        %v1632 = vsel %vm791, %v1630, %v1631
        %v1633 = vrot.slane %v1037, 5
        %v1634 = vrot.slane %v1633, 4
        %v1635 = vrot.slane %v1038, 5
        %v1636 = vsel %vm791, %v1634, %v1635
        %v1637 = vrot.slane %v1635, 4
        %v1638 = vrot.slane %v1039, 5
        %v1639 = vsel %vm791, %v1637, %v1638
        %v1640 = vunpack.c.l.b16 %v1587
        %v1641 = vunpack.c.l.b16 %v1590
        %v1642 = vunpack.c.l.b16 %v1594
        %v1643 = vunpack.c.l.b16 %v1597
        %v1644 = vunpack.c.l.b16 %v1601
        %v1645 = vunpack.c.l.b16 %v1604
        %v1646 = vunpack.c.l.b16 %v1608
        %v1647 = vunpack.c.l.b16 %v1611
        %v1648 = vunpack.c.l.b16 %v1615
        %v1649 = vunpack.c.l.b16 %v1618
        %v1650 = vunpack.c.l.b16 %v1622
        %v1651 = vunpack.c.l.b16 %v1625
        %v1652 = vunpack.c.l.b16 %v1629
        %v1653 = vunpack.c.l.b16 %v1632
        %v1654 = vunpack.c.l.b16 %v1636
        %v1655 = vunpack.c.l.b16 %v1639
        %v1656 = vpack.c.b16 %v1641, %v1640
        %v1657 = vpack.c.b16 %v1643, %v1642
        %v1658 = vpack.c.b16 %v1645, %v1644
        %v1659 = vpack.c.b16 %v1647, %v1646
        %v1660 = vpack.c.b16 %v1649, %v1648
        %v1661 = vpack.c.b16 %v1651, %v1650
        %v1662 = vpack.c.b16 %v1653, %v1652
        %v1663 = vpack.c.b16 %v1655, %v1654
        %v1665 = vsel %vm491, %v1656, 0
        %v1668 = vsel %vm491, %v1657, 0
        %v1671 = vsel %vm491, %v1658, 0
        %v1674 = vsel %vm491, %v1659, 0
        %v1677 = vsel %vm491, %v1660, 0
        %v1680 = vsel %vm491, %v1661, 0
        %v1683 = vsel %vm491, %v1662, 0
        %v1686 = vsel %vm491, %v1663, 0
        %v1689 = vsel %vm516, %v241, 0
        %1691 = vmatprep.subr.bf16.mxu0 0
        %1692 = vmatpush1.bf16.msra.mxu0 %v1689
        %1693 = vmatprep.subr.bf16.mxu0 0
        %1694 = vmatpush1.bf16.msra.mxu0 0
        %1695 = vmatprep.subr.bf16.mxu0 0
        %1696 = vmatpush1.bf16.msra.mxu0 0
        %1697 = vmatprep.subr.bf16.mxu0 0
        %1698 = vmatpush1.bf16.msra.mxu0 0
        %1699 = vmatprep.subr.bf16.mxu0 0
        %1700 = vmatpush1.bf16.msra.mxu0 0
        %1701 = vmatprep.subr.bf16.mxu0 0
        %1702 = vmatpush1.bf16.msra.mxu0 0
        %1703 = vmatprep.subr.bf16.mxu0 0
        %1704 = vmatpush1.bf16.msra.mxu0 0
        %1705 = vmatprep.subr.bf16.mxu0 0
        %1706 = vmatpush1.bf16.msra.mxu0 0
        %1707 = vmatprep.subr.bf16.mxu0 0
        %1708 = vmatpush1.bf16.msra.mxu0 0
        %1709 = vmatprep.subr.bf16.mxu0 0
        %1710 = vmatpush1.bf16.msra.mxu0 0
        %1711 = vmatprep.subr.bf16.mxu0 0
        %1712 = vmatpush1.bf16.msra.mxu0 0
        %1713 = vmatprep.subr.bf16.mxu0 0
        %1714 = vmatpush1.bf16.msra.mxu0 0
        %1715 = vmatprep.subr.bf16.mxu0 0
        %1716 = vmatpush1.bf16.msra.mxu0 0
        %1717 = vmatprep.subr.bf16.mxu0 0
        %1718 = vmatpush1.bf16.msra.mxu0 0
        %1719 = vmatprep.subr.bf16.mxu0 0
        %1720 = vmatpush1.bf16.msra.mxu0 0
        %1721 = vmatprep.subr.bf16.mxu0 0
        %1722 = vmatpush1.bf16.msra.mxu0 0
        %1723 = vmatprep.mubr.bf16.mxu0 0
        %1724 = vmatmul.mubr.bf16.gmra.mrb[0].mxu0 %v1665
        %v1725 = vpop.f32.mrb[0].mxu0
        %v1726 = vadd.f32 0.0, %v1725
        %v1727 = vpop.f32.mrb[0].mxu0
        %v1728 = vpop.f32.mrb[0].mxu0
        %v1729 = vadd.f32 0.0, %v1728
        %v1730 = vpop.f32.mrb[0].mxu0
        %1731 = vmatprep.mubr.bf16.mxu0 0
        %1732 = vmatmul.mubr.bf16.gmra.mrb[0].mxu0 %v1668
        %v1733 = vpop.f32.mrb[0].mxu0
        %v1734 = vadd.f32 0.0, %v1733
        %v1735 = vpop.f32.mrb[0].mxu0
        %v1736 = vpop.f32.mrb[0].mxu0
        %v1737 = vadd.f32 0.0, %v1736
        %v1738 = vpop.f32.mrb[0].mxu0
        %1739 = vmatprep.mubr.bf16.mxu0 0
        %1740 = vmatmul.mubr.bf16.gmra.mrb[0].mxu0 %v1671
        %v1741 = vpop.f32.mrb[0].mxu0
        %v1742 = vadd.f32 0.0, %v1741
        %v1743 = vpop.f32.mrb[0].mxu0
        %v1744 = vpop.f32.mrb[0].mxu0
        %v1745 = vadd.f32 0.0, %v1744
        %v1746 = vpop.f32.mrb[0].mxu0
        %1747 = vmatprep.mubr.bf16.mxu0 0
        %1748 = vmatmul.mubr.bf16.gmra.mrb[0].mxu0 %v1674
        %v1749 = vpop.f32.mrb[0].mxu0
        %v1750 = vadd.f32 0.0, %v1749
        %v1751 = vpop.f32.mrb[0].mxu0
        %v1752 = vpop.f32.mrb[0].mxu0
        %v1753 = vadd.f32 0.0, %v1752
        %v1754 = vpop.f32.mrb[0].mxu0
        %1755 = vmatprep.mubr.bf16.mxu0 0
        %1756 = vmatmul.mubr.bf16.gmra.mrb[0].mxu0 %v1677
        %v1757 = vpop.f32.mrb[0].mxu0
        %v1758 = vadd.f32 0.0, %v1757
        %v1759 = vpop.f32.mrb[0].mxu0
        %v1760 = vpop.f32.mrb[0].mxu0
        %v1761 = vadd.f32 0.0, %v1760
        %v1762 = vpop.f32.mrb[0].mxu0
        %1763 = vmatprep.mubr.bf16.mxu0 0
        %1764 = vmatmul.mubr.bf16.gmra.mrb[0].mxu0 %v1680
        %v1765 = vpop.f32.mrb[0].mxu0
        %v1766 = vadd.f32 0.0, %v1765
        %v1767 = vpop.f32.mrb[0].mxu0
        %v1768 = vpop.f32.mrb[0].mxu0
        %v1769 = vadd.f32 0.0, %v1768
        %v1770 = vpop.f32.mrb[0].mxu0
        %1771 = vmatprep.mubr.bf16.mxu0 0
        %1772 = vmatmul.mubr.bf16.gmra.mrb[0].mxu0 %v1683
        %v1773 = vpop.f32.mrb[0].mxu0
        %v1774 = vadd.f32 0.0, %v1773
        %v1775 = vpop.f32.mrb[0].mxu0
        %v1776 = vpop.f32.mrb[0].mxu0
        %v1777 = vadd.f32 0.0, %v1776
        %v1778 = vpop.f32.mrb[0].mxu0
        %1779 = vmatprep.mubr.bf16.mxu0 0
        %1780 = vmatmul.mubr.bf16.gmra.mrb[0].mxu0 %v1686
        %v1781 = vpop.f32.mrb[0].mxu0
        %v1782 = vadd.f32 0.0, %v1781
        %v1783 = vpop.f32.mrb[0].mxu0
        %v1784 = vpop.f32.mrb[0].mxu0
        %v1785 = vadd.f32 0.0, %v1784
        %v1786 = vpop.f32.mrb[0].mxu0
        %1787 = vdwg.mxu0
        %v1788 = vadd.f32 %v1560, %v1726
        %v1789 = vadd.f32 %v1561, %v1729
        %v1790 = vadd.f32 %v1562, %v1734
        %v1791 = vadd.f32 %v1563, %v1737
        %v1792 = vadd.f32 %v1564, %v1742
        %v1793 = vadd.f32 %v1565, %v1745
        %v1794 = vadd.f32 %v1566, %v1750
        %v1795 = vadd.f32 %v1567, %v1753
        %v1796 = vadd.f32 %v1568, %v1758
        %v1797 = vadd.f32 %v1569, %v1761
        %v1798 = vadd.f32 %v1570, %v1766
        %v1799 = vadd.f32 %v1571, %v1769
        %v1800 = vadd.f32 %v1572, %v1774
        %v1801 = vadd.f32 %v1573, %v1777
        %v1802 = vadd.f32 %v1574, %v1782
        %v1803 = vadd.f32 %v1575, %v1785
        %s1804 = sadd.s32 %s235, 2
        %s1805 = smul.u32 %s1804, 3
        %s1806 = smul.addr %s1805, 4
        %s1807 = scalar_lea.vmem %s222, %s1806
        %v1808 = vld [vmem:[%s1807] sm:$0xf]
        %v1809 = vld [vmem:[%s1807 + $0x4] sm:$0xf]
        %v1810 = vld [vmem:[%s1807 + $0x8] sm:$0x1]
        %v1811 = vld [vmem:[%s1807 + $0xc] sm:$0xf]
        %v1812 = vld [vmem:[%s1807 + $0x10] sm:$0xf]
        %v1813 = vld [vmem:[%s1807 + $0x14] sm:$0x1]
        %v1814 = vld [vmem:[%s1807 + $0x18] sm:$0xf]
        %v1815 = vld [vmem:[%s1807 + $0x1c] sm:$0xf]
        %v1816 = vld [vmem:[%s1807 + $0x20] sm:$0x1]
        %v1817 = vld [vmem:[%s1807 + $0x24] sm:$0xf]
        %v1818 = vld [vmem:[%s1807 + $0x28] sm:$0xf]
        %v1819 = vld [vmem:[%s1807 + $0x2c] sm:$0x1]
        %v1820 = vld [vmem:[%s1807 + $0x30] sm:$0xf]
        %v1821 = vld [vmem:[%s1807 + $0x34] sm:$0xf]
        %v1822 = vld [vmem:[%s1807 + $0x38] sm:$0x1]
        %v1823 = vld [vmem:[%s1807 + $0x3c] sm:$0xf]
        %v1824 = vld [vmem:[%s1807 + $0x40] sm:$0xf]
        %v1825 = vld [vmem:[%s1807 + $0x44] sm:$0x1]
        %v1826 = vld [vmem:[%s1807 + $0x48] sm:$0xf]
        %v1827 = vld [vmem:[%s1807 + $0x4c] sm:$0xf]
        %v1828 = vld [vmem:[%s1807 + $0x50] sm:$0x1]
        %v1829 = vld [vmem:[%s1807 + $0x54] sm:$0xf]
        %v1830 = vld [vmem:[%s1807 + $0x58] sm:$0xf]
        %v1831 = vld [vmem:[%s1807 + $0x5c] sm:$0x1]
        %v1848 = vunpack.c.l.b16 %v1808
        %v1849 = vunpack.c.l.b16 %v1809
        %v1850 = vunpack.c.l.b16 %v1811
        %v1851 = vunpack.c.l.b16 %v1812
        %v1852 = vunpack.c.l.b16 %v1814
        %v1853 = vunpack.c.l.b16 %v1815
        %v1854 = vunpack.c.l.b16 %v1817
        %v1855 = vunpack.c.l.b16 %v1818
        %v1856 = vunpack.c.l.b16 %v1820
        %v1857 = vunpack.c.l.b16 %v1821
        %v1858 = vunpack.c.l.b16 %v1823
        %v1859 = vunpack.c.l.b16 %v1824
        %v1860 = vunpack.c.l.b16 %v1826
        %v1861 = vunpack.c.l.b16 %v1827
        %v1862 = vunpack.c.l.b16 %v1829
        %v1863 = vunpack.c.l.b16 %v1830
        %v1864 = vpack.c.b16 %v1849, %v1848
        %v1865 = vpack.c.b16 %v1851, %v1850
        %v1866 = vpack.c.b16 %v1853, %v1852
        %v1867 = vpack.c.b16 %v1855, %v1854
        %v1868 = vpack.c.b16 %v1857, %v1856
        %v1869 = vpack.c.b16 %v1859, %v1858
        %v1870 = vpack.c.b16 %v1861, %v1860
        %v1871 = vpack.c.b16 %v1863, %v1862
        %v1873 = vsel %vm491, %v1864, 0
        %v1876 = vsel %vm491, %v1865, 0
        %v1879 = vsel %vm491, %v1866, 0
        %v1882 = vsel %vm491, %v1867, 0
        %v1885 = vsel %vm491, %v1868, 0
        %v1888 = vsel %vm491, %v1869, 0
        %v1891 = vsel %vm491, %v1870, 0
        %v1894 = vsel %vm491, %v1871, 0
        %v1897 = vsel %vm516, %v242, 0
        %1899 = vmatprep.subr.bf16.mxu0 0
        %1900 = vmatpush1.bf16.msra.mxu0 %v1897
        %1901 = vmatprep.subr.bf16.mxu0 0
        %1902 = vmatpush1.bf16.msra.mxu0 0
        %1903 = vmatprep.subr.bf16.mxu0 0
        %1904 = vmatpush1.bf16.msra.mxu0 0
        %1905 = vmatprep.subr.bf16.mxu0 0
        %1906 = vmatpush1.bf16.msra.mxu0 0
        %1907 = vmatprep.subr.bf16.mxu0 0
        %1908 = vmatpush1.bf16.msra.mxu0 0
        %1909 = vmatprep.subr.bf16.mxu0 0
        %1910 = vmatpush1.bf16.msra.mxu0 0
        %1911 = vmatprep.subr.bf16.mxu0 0
        %1912 = vmatpush1.bf16.msra.mxu0 0
        %1913 = vmatprep.subr.bf16.mxu0 0
        %1914 = vmatpush1.bf16.msra.mxu0 0
        %1915 = vmatprep.subr.bf16.mxu0 0
        %1916 = vmatpush1.bf16.msra.mxu0 0
        %1917 = vmatprep.subr.bf16.mxu0 0
        %1918 = vmatpush1.bf16.msra.mxu0 0
        %1919 = vmatprep.subr.bf16.mxu0 0
        %1920 = vmatpush1.bf16.msra.mxu0 0
        %1921 = vmatprep.subr.bf16.mxu0 0
        %1922 = vmatpush1.bf16.msra.mxu0 0
        %1923 = vmatprep.subr.bf16.mxu0 0
        %1924 = vmatpush1.bf16.msra.mxu0 0
        %1925 = vmatprep.subr.bf16.mxu0 0
        %1926 = vmatpush1.bf16.msra.mxu0 0
        %1927 = vmatprep.subr.bf16.mxu0 0
        %1928 = vmatpush1.bf16.msra.mxu0 0
        %1929 = vmatprep.subr.bf16.mxu0 0
        %1930 = vmatpush1.bf16.msra.mxu0 0
        %1931 = vmatprep.mubr.bf16.mxu0 0
        %1932 = vmatmul.mubr.bf16.gmra.mrb[0].mxu0 %v1873
        %v1933 = vpop.f32.mrb[0].mxu0
        %v1934 = vadd.f32 0.0, %v1933
        %v1935 = vpop.f32.mrb[0].mxu0
        %v1936 = vpop.f32.mrb[0].mxu0
        %v1937 = vadd.f32 0.0, %v1936
        %v1938 = vpop.f32.mrb[0].mxu0
        %1939 = vmatprep.mubr.bf16.mxu0 0
        %1940 = vmatmul.mubr.bf16.gmra.mrb[0].mxu0 %v1876
        %v1941 = vpop.f32.mrb[0].mxu0
        %v1942 = vadd.f32 0.0, %v1941
        %v1943 = vpop.f32.mrb[0].mxu0
        %v1944 = vpop.f32.mrb[0].mxu0
        %v1945 = vadd.f32 0.0, %v1944
        %v1946 = vpop.f32.mrb[0].mxu0
        %1947 = vmatprep.mubr.bf16.mxu0 0
        %1948 = vmatmul.mubr.bf16.gmra.mrb[0].mxu0 %v1879
        %v1949 = vpop.f32.mrb[0].mxu0
        %v1950 = vadd.f32 0.0, %v1949
        %v1951 = vpop.f32.mrb[0].mxu0
        %v1952 = vpop.f32.mrb[0].mxu0
        %v1953 = vadd.f32 0.0, %v1952
        %v1954 = vpop.f32.mrb[0].mxu0
        %1955 = vmatprep.mubr.bf16.mxu0 0
        %1956 = vmatmul.mubr.bf16.gmra.mrb[0].mxu0 %v1882
        %v1957 = vpop.f32.mrb[0].mxu0
        %v1958 = vadd.f32 0.0, %v1957
        %v1959 = vpop.f32.mrb[0].mxu0
        %v1960 = vpop.f32.mrb[0].mxu0
        %v1961 = vadd.f32 0.0, %v1960
        %v1962 = vpop.f32.mrb[0].mxu0
        %1963 = vmatprep.mubr.bf16.mxu0 0
        %1964 = vmatmul.mubr.bf16.gmra.mrb[0].mxu0 %v1885
        %v1965 = vpop.f32.mrb[0].mxu0
        %v1966 = vadd.f32 0.0, %v1965
        %v1967 = vpop.f32.mrb[0].mxu0
        %v1968 = vpop.f32.mrb[0].mxu0
        %v1969 = vadd.f32 0.0, %v1968
        %v1970 = vpop.f32.mrb[0].mxu0
        %1971 = vmatprep.mubr.bf16.mxu0 0
        %1972 = vmatmul.mubr.bf16.gmra.mrb[0].mxu0 %v1888
        %v1973 = vpop.f32.mrb[0].mxu0
        %v1974 = vadd.f32 0.0, %v1973
        %v1975 = vpop.f32.mrb[0].mxu0
        %v1976 = vpop.f32.mrb[0].mxu0
        %v1977 = vadd.f32 0.0, %v1976
        %v1978 = vpop.f32.mrb[0].mxu0
        %1979 = vmatprep.mubr.bf16.mxu0 0
        %1980 = vmatmul.mubr.bf16.gmra.mrb[0].mxu0 %v1891
        %v1981 = vpop.f32.mrb[0].mxu0
        %v1982 = vadd.f32 0.0, %v1981
        %v1983 = vpop.f32.mrb[0].mxu0
        %v1984 = vpop.f32.mrb[0].mxu0
        %v1985 = vadd.f32 0.0, %v1984
        %v1986 = vpop.f32.mrb[0].mxu0
        %1987 = vmatprep.mubr.bf16.mxu0 0
        %1988 = vmatmul.mubr.bf16.gmra.mrb[0].mxu0 %v1894
        %v1989 = vpop.f32.mrb[0].mxu0
        %v1990 = vadd.f32 0.0, %v1989
        %v1991 = vpop.f32.mrb[0].mxu0
        %v1992 = vpop.f32.mrb[0].mxu0
        %v1993 = vadd.f32 0.0, %v1992
        %v1994 = vpop.f32.mrb[0].mxu0
        %1995 = vdwg.mxu0
        %v1996 = vadd.f32 %v1788, %v1934
        %v1997 = vadd.f32 %v1789, %v1937
        %v1998 = vadd.f32 %v1790, %v1942
        %v1999 = vadd.f32 %v1791, %v1945
        %v2000 = vadd.f32 %v1792, %v1950
        %v2001 = vadd.f32 %v1793, %v1953
        %v2002 = vadd.f32 %v1794, %v1958
        %v2003 = vadd.f32 %v1795, %v1961
        %v2004 = vadd.f32 %v1796, %v1966
        %v2005 = vadd.f32 %v1797, %v1969
        %v2006 = vadd.f32 %v1798, %v1974
        %v2007 = vadd.f32 %v1799, %v1977
        %v2008 = vadd.f32 %v1800, %v1982
        %v2009 = vadd.f32 %v1801, %v1985
        %v2010 = vadd.f32 %v1802, %v1990
        %v2011 = vadd.f32 %v1803, %v1993
        %v2013 = vshrl.u32 %v1808, 16
        %v2015 = vrot.slane %v2013, 4
        %v2016 = vshll.u32 %v1808, 16
        %v2018 = vrot.slane %v2016, 5
        %v2019 = vor.u32 %v2015, %v2018
        %v2020 = vrot.slane %v2019, 4
        %v2022 = vshll.u32 %v1809, 16
        %v2024 = vrot.slane %v2022, 5
        %v2025 = vsel %vm274, %v2020, %v2024
        %v2026 = vshrl.u32 %v1809, 16
        %v2028 = vrot.slane %v2026, 4
        %v2029 = vor.u32 %v2028, %v2024
        %v2030 = vrot.slane %v2029, 4
        %v2032 = vshll.u32 %v1810, 16
        %v2034 = vrot.slane %v2032, 5
        %v2035 = vsel %vm274, %v2030, %v2034
        %v2037 = vshrl.u32 %v1811, 16
        %v2039 = vrot.slane %v2037, 4
        %v2040 = vshll.u32 %v1811, 16
        %v2042 = vrot.slane %v2040, 5
        %v2043 = vor.u32 %v2039, %v2042
        %v2044 = vrot.slane %v2043, 4
        %v2046 = vshll.u32 %v1812, 16
        %v2048 = vrot.slane %v2046, 5
        %v2049 = vsel %vm274, %v2044, %v2048
        %v2050 = vshrl.u32 %v1812, 16
        %v2052 = vrot.slane %v2050, 4
        %v2053 = vor.u32 %v2052, %v2048
        %v2054 = vrot.slane %v2053, 4
        %v2056 = vshll.u32 %v1813, 16
        %v2058 = vrot.slane %v2056, 5
        %v2059 = vsel %vm274, %v2054, %v2058
        %v2061 = vshrl.u32 %v1814, 16
        %v2063 = vrot.slane %v2061, 4
        %v2064 = vshll.u32 %v1814, 16
        %v2066 = vrot.slane %v2064, 5
        %v2067 = vor.u32 %v2063, %v2066
        %v2068 = vrot.slane %v2067, 4
        %v2070 = vshll.u32 %v1815, 16
        %v2072 = vrot.slane %v2070, 5
        %v2073 = vsel %vm274, %v2068, %v2072
        %v2074 = vshrl.u32 %v1815, 16
        %v2076 = vrot.slane %v2074, 4
        %v2077 = vor.u32 %v2076, %v2072
        %v2078 = vrot.slane %v2077, 4
        %v2080 = vshll.u32 %v1816, 16
        %v2082 = vrot.slane %v2080, 5
        %v2083 = vsel %vm274, %v2078, %v2082
        %v2085 = vshrl.u32 %v1817, 16
        %v2087 = vrot.slane %v2085, 4
        %v2088 = vshll.u32 %v1817, 16
        %v2090 = vrot.slane %v2088, 5
        %v2091 = vor.u32 %v2087, %v2090
        %v2092 = vrot.slane %v2091, 4
        %v2094 = vshll.u32 %v1818, 16
        %v2096 = vrot.slane %v2094, 5
        %v2097 = vsel %vm274, %v2092, %v2096
        %v2098 = vshrl.u32 %v1818, 16
        %v2100 = vrot.slane %v2098, 4
        %v2101 = vor.u32 %v2100, %v2096
        %v2102 = vrot.slane %v2101, 4
        %v2104 = vshll.u32 %v1819, 16
        %v2106 = vrot.slane %v2104, 5
        %v2107 = vsel %vm274, %v2102, %v2106
        %v2109 = vshrl.u32 %v1820, 16
        %v2111 = vrot.slane %v2109, 4
        %v2112 = vshll.u32 %v1820, 16
        %v2114 = vrot.slane %v2112, 5
        %v2115 = vor.u32 %v2111, %v2114
        %v2116 = vrot.slane %v2115, 4
        %v2118 = vshll.u32 %v1821, 16
        %v2120 = vrot.slane %v2118, 5
        %v2121 = vsel %vm274, %v2116, %v2120
        %v2122 = vshrl.u32 %v1821, 16
        %v2124 = vrot.slane %v2122, 4
        %v2125 = vor.u32 %v2124, %v2120
        %v2126 = vrot.slane %v2125, 4
        %v2128 = vshll.u32 %v1822, 16
        %v2130 = vrot.slane %v2128, 5
        %v2131 = vsel %vm274, %v2126, %v2130
        %v2133 = vshrl.u32 %v1823, 16
        %v2135 = vrot.slane %v2133, 4
        %v2136 = vshll.u32 %v1823, 16
        %v2138 = vrot.slane %v2136, 5
        %v2139 = vor.u32 %v2135, %v2138
        %v2140 = vrot.slane %v2139, 4
        %v2142 = vshll.u32 %v1824, 16
        %v2144 = vrot.slane %v2142, 5
        %v2145 = vsel %vm274, %v2140, %v2144
        %v2146 = vshrl.u32 %v1824, 16
        %v2148 = vrot.slane %v2146, 4
        %v2149 = vor.u32 %v2148, %v2144
        %v2150 = vrot.slane %v2149, 4
        %v2152 = vshll.u32 %v1825, 16
        %v2154 = vrot.slane %v2152, 5
        %v2155 = vsel %vm274, %v2150, %v2154
        %v2157 = vshrl.u32 %v1826, 16
        %v2159 = vrot.slane %v2157, 4
        %v2160 = vshll.u32 %v1826, 16
        %v2162 = vrot.slane %v2160, 5
        %v2163 = vor.u32 %v2159, %v2162
        %v2164 = vrot.slane %v2163, 4
        %v2166 = vshll.u32 %v1827, 16
        %v2168 = vrot.slane %v2166, 5
        %v2169 = vsel %vm274, %v2164, %v2168
        %v2170 = vshrl.u32 %v1827, 16
        %v2172 = vrot.slane %v2170, 4
        %v2173 = vor.u32 %v2172, %v2168
        %v2174 = vrot.slane %v2173, 4
        %v2176 = vshll.u32 %v1828, 16
        %v2178 = vrot.slane %v2176, 5
        %v2179 = vsel %vm274, %v2174, %v2178
        %v2181 = vshrl.u32 %v1829, 16
        %v2183 = vrot.slane %v2181, 4
        %v2184 = vshll.u32 %v1829, 16
        %v2186 = vrot.slane %v2184, 5
        %v2187 = vor.u32 %v2183, %v2186
        %v2188 = vrot.slane %v2187, 4
        %v2190 = vshll.u32 %v1830, 16
        %v2192 = vrot.slane %v2190, 5
        %v2193 = vsel %vm274, %v2188, %v2192
        %v2194 = vshrl.u32 %v1830, 16
        %v2196 = vrot.slane %v2194, 4
        %v2197 = vor.u32 %v2196, %v2192
        %v2198 = vrot.slane %v2197, 4
        %v2200 = vshll.u32 %v1831, 16
        %v2202 = vrot.slane %v2200, 5
        %v2203 = vsel %vm274, %v2198, %v2202
        %v2204 = vunpack.c.l.b16 %v2025
        %v2205 = vunpack.c.l.b16 %v2035
        %v2206 = vunpack.c.l.b16 %v2049
        %v2207 = vunpack.c.l.b16 %v2059
        %v2208 = vunpack.c.l.b16 %v2073
        %v2209 = vunpack.c.l.b16 %v2083
        %v2210 = vunpack.c.l.b16 %v2097
        %v2211 = vunpack.c.l.b16 %v2107
        %v2212 = vunpack.c.l.b16 %v2121
        %v2213 = vunpack.c.l.b16 %v2131
        %v2214 = vunpack.c.l.b16 %v2145
        %v2215 = vunpack.c.l.b16 %v2155
        %v2216 = vunpack.c.l.b16 %v2169
        %v2217 = vunpack.c.l.b16 %v2179
        %v2218 = vunpack.c.l.b16 %v2193
        %v2219 = vunpack.c.l.b16 %v2203
        %v2220 = vpack.c.b16 %v2205, %v2204
        %v2221 = vpack.c.b16 %v2207, %v2206
        %v2222 = vpack.c.b16 %v2209, %v2208
        %v2223 = vpack.c.b16 %v2211, %v2210
        %v2224 = vpack.c.b16 %v2213, %v2212
        %v2225 = vpack.c.b16 %v2215, %v2214
        %v2226 = vpack.c.b16 %v2217, %v2216
        %v2227 = vpack.c.b16 %v2219, %v2218
        %v2229 = vsel %vm491, %v2220, 0
        %v2232 = vsel %vm491, %v2221, 0
        %v2235 = vsel %vm491, %v2222, 0
        %v2238 = vsel %vm491, %v2223, 0
        %v2241 = vsel %vm491, %v2224, 0
        %v2244 = vsel %vm491, %v2225, 0
        %v2247 = vsel %vm491, %v2226, 0
        %v2250 = vsel %vm491, %v2227, 0
        %v2253 = vsel %vm516, %v243, 0
        %2255 = vmatprep.subr.bf16.mxu0 0
        %2256 = vmatpush1.bf16.msra.mxu0 %v2253
        %2257 = vmatprep.subr.bf16.mxu0 0
        %2258 = vmatpush1.bf16.msra.mxu0 0
        %2259 = vmatprep.subr.bf16.mxu0 0
        %2260 = vmatpush1.bf16.msra.mxu0 0
        %2261 = vmatprep.subr.bf16.mxu0 0
        %2262 = vmatpush1.bf16.msra.mxu0 0
        %2263 = vmatprep.subr.bf16.mxu0 0
        %2264 = vmatpush1.bf16.msra.mxu0 0
        %2265 = vmatprep.subr.bf16.mxu0 0
        %2266 = vmatpush1.bf16.msra.mxu0 0
        %2267 = vmatprep.subr.bf16.mxu0 0
        %2268 = vmatpush1.bf16.msra.mxu0 0
        %2269 = vmatprep.subr.bf16.mxu0 0
        %2270 = vmatpush1.bf16.msra.mxu0 0
        %2271 = vmatprep.subr.bf16.mxu0 0
        %2272 = vmatpush1.bf16.msra.mxu0 0
        %2273 = vmatprep.subr.bf16.mxu0 0
        %2274 = vmatpush1.bf16.msra.mxu0 0
        %2275 = vmatprep.subr.bf16.mxu0 0
        %2276 = vmatpush1.bf16.msra.mxu0 0
        %2277 = vmatprep.subr.bf16.mxu0 0
        %2278 = vmatpush1.bf16.msra.mxu0 0
        %2279 = vmatprep.subr.bf16.mxu0 0
        %2280 = vmatpush1.bf16.msra.mxu0 0
        %2281 = vmatprep.subr.bf16.mxu0 0
        %2282 = vmatpush1.bf16.msra.mxu0 0
        %2283 = vmatprep.subr.bf16.mxu0 0
        %2284 = vmatpush1.bf16.msra.mxu0 0
        %2285 = vmatprep.subr.bf16.mxu0 0
        %2286 = vmatpush1.bf16.msra.mxu0 0
        %2287 = vmatprep.mubr.bf16.mxu0 0
        %2288 = vmatmul.mubr.bf16.gmra.mrb[0].mxu0 %v2229
        %v2289 = vpop.f32.mrb[0].mxu0
        %v2290 = vadd.f32 0.0, %v2289
        %v2291 = vpop.f32.mrb[0].mxu0
        %v2292 = vpop.f32.mrb[0].mxu0
        %v2293 = vadd.f32 0.0, %v2292
        %v2294 = vpop.f32.mrb[0].mxu0
        %2295 = vmatprep.mubr.bf16.mxu0 0
        %2296 = vmatmul.mubr.bf16.gmra.mrb[0].mxu0 %v2232
        %v2297 = vpop.f32.mrb[0].mxu0
        %v2298 = vadd.f32 0.0, %v2297
        %v2299 = vpop.f32.mrb[0].mxu0
        %v2300 = vpop.f32.mrb[0].mxu0
        %v2301 = vadd.f32 0.0, %v2300
        %v2302 = vpop.f32.mrb[0].mxu0
        %2303 = vmatprep.mubr.bf16.mxu0 0
        %2304 = vmatmul.mubr.bf16.gmra.mrb[0].mxu0 %v2235
        %v2305 = vpop.f32.mrb[0].mxu0
        %v2306 = vadd.f32 0.0, %v2305
        %v2307 = vpop.f32.mrb[0].mxu0
        %v2308 = vpop.f32.mrb[0].mxu0
        %v2309 = vadd.f32 0.0, %v2308
        %v2310 = vpop.f32.mrb[0].mxu0
        %2311 = vmatprep.mubr.bf16.mxu0 0
        %2312 = vmatmul.mubr.bf16.gmra.mrb[0].mxu0 %v2238
        %v2313 = vpop.f32.mrb[0].mxu0
        %v2314 = vadd.f32 0.0, %v2313
        %v2315 = vpop.f32.mrb[0].mxu0
        %v2316 = vpop.f32.mrb[0].mxu0
        %v2317 = vadd.f32 0.0, %v2316
        %v2318 = vpop.f32.mrb[0].mxu0
        %2319 = vmatprep.mubr.bf16.mxu0 0
        %2320 = vmatmul.mubr.bf16.gmra.mrb[0].mxu0 %v2241
        %v2321 = vpop.f32.mrb[0].mxu0
        %v2322 = vadd.f32 0.0, %v2321
        %v2323 = vpop.f32.mrb[0].mxu0
        %v2324 = vpop.f32.mrb[0].mxu0
        %v2325 = vadd.f32 0.0, %v2324
        %v2326 = vpop.f32.mrb[0].mxu0
        %2327 = vmatprep.mubr.bf16.mxu0 0
        %2328 = vmatmul.mubr.bf16.gmra.mrb[0].mxu0 %v2244
        %v2329 = vpop.f32.mrb[0].mxu0
        %v2330 = vadd.f32 0.0, %v2329
        %v2331 = vpop.f32.mrb[0].mxu0
        %v2332 = vpop.f32.mrb[0].mxu0
        %v2333 = vadd.f32 0.0, %v2332
        %v2334 = vpop.f32.mrb[0].mxu0
        %2335 = vmatprep.mubr.bf16.mxu0 0
        %2336 = vmatmul.mubr.bf16.gmra.mrb[0].mxu0 %v2247
        %v2337 = vpop.f32.mrb[0].mxu0
        %v2338 = vadd.f32 0.0, %v2337
        %v2339 = vpop.f32.mrb[0].mxu0
        %v2340 = vpop.f32.mrb[0].mxu0
        %v2341 = vadd.f32 0.0, %v2340
        %v2342 = vpop.f32.mrb[0].mxu0
        %2343 = vmatprep.mubr.bf16.mxu0 0
        %2344 = vmatmul.mubr.bf16.gmra.mrb[0].mxu0 %v2250
        %v2345 = vpop.f32.mrb[0].mxu0
        %v2346 = vadd.f32 0.0, %v2345
        %v2347 = vpop.f32.mrb[0].mxu0
        %v2348 = vpop.f32.mrb[0].mxu0
        %v2349 = vadd.f32 0.0, %v2348
        %v2350 = vpop.f32.mrb[0].mxu0
        %2351 = vdwg.mxu0
        %v2352 = vadd.f32 %v1996, %v2290
        %v2353 = vadd.f32 %v1997, %v2293
        %v2354 = vadd.f32 %v1998, %v2298
        %v2355 = vadd.f32 %v1999, %v2301
        %v2356 = vadd.f32 %v2000, %v2306
        %v2357 = vadd.f32 %v2001, %v2309
        %v2358 = vadd.f32 %v2002, %v2314
        %v2359 = vadd.f32 %v2003, %v2317
        %v2360 = vadd.f32 %v2004, %v2322
        %v2361 = vadd.f32 %v2005, %v2325
        %v2362 = vadd.f32 %v2006, %v2330
        %v2363 = vadd.f32 %v2007, %v2333
        %v2364 = vadd.f32 %v2008, %v2338
        %v2365 = vadd.f32 %v2009, %v2341
        %v2366 = vadd.f32 %v2010, %v2346
        %v2367 = vadd.f32 %v2011, %v2349
        %v2376 = vrot.slane %v1808, 5
        %v2377 = vrot.slane %v2376, 4
        %v2378 = vrot.slane %v1809, 5
        %v2379 = vsel %vm791, %v2377, %v2378
        %v2380 = vrot.slane %v2378, 4
        %v2381 = vrot.slane %v1810, 5
        %v2382 = vsel %vm791, %v2380, %v2381
        %v2383 = vrot.slane %v1811, 5
        %v2384 = vrot.slane %v2383, 4
        %v2385 = vrot.slane %v1812, 5
        %v2386 = vsel %vm791, %v2384, %v2385
        %v2387 = vrot.slane %v2385, 4
        %v2388 = vrot.slane %v1813, 5
        %v2389 = vsel %vm791, %v2387, %v2388
        %v2390 = vrot.slane %v1814, 5
        %v2391 = vrot.slane %v2390, 4
        %v2392 = vrot.slane %v1815, 5
        %v2393 = vsel %vm791, %v2391, %v2392
        %v2394 = vrot.slane %v2392, 4
        %v2395 = vrot.slane %v1816, 5
        %v2396 = vsel %vm791, %v2394, %v2395
        %v2397 = vrot.slane %v1817, 5
        %v2398 = vrot.slane %v2397, 4
        %v2399 = vrot.slane %v1818, 5
        %v2400 = vsel %vm791, %v2398, %v2399
        %v2401 = vrot.slane %v2399, 4
        %v2402 = vrot.slane %v1819, 5
        %v2403 = vsel %vm791, %v2401, %v2402
        %v2404 = vrot.slane %v1820, 5
        %v2405 = vrot.slane %v2404, 4
        %v2406 = vrot.slane %v1821, 5
        %v2407 = vsel %vm791, %v2405, %v2406
        %v2408 = vrot.slane %v2406, 4
        %v2409 = vrot.slane %v1822, 5
        %v2410 = vsel %vm791, %v2408, %v2409
        %v2411 = vrot.slane %v1823, 5
        %v2412 = vrot.slane %v2411, 4
        %v2413 = vrot.slane %v1824, 5
        %v2414 = vsel %vm791, %v2412, %v2413
        %v2415 = vrot.slane %v2413, 4
        %v2416 = vrot.slane %v1825, 5
        %v2417 = vsel %vm791, %v2415, %v2416
        %v2418 = vrot.slane %v1826, 5
        %v2419 = vrot.slane %v2418, 4
        %v2420 = vrot.slane %v1827, 5
        %v2421 = vsel %vm791, %v2419, %v2420
        %v2422 = vrot.slane %v2420, 4
        %v2423 = vrot.slane %v1828, 5
        %v2424 = vsel %vm791, %v2422, %v2423
        %v2425 = vrot.slane %v1829, 5
        %v2426 = vrot.slane %v2425, 4
        %v2427 = vrot.slane %v1830, 5
        %v2428 = vsel %vm791, %v2426, %v2427
        %v2429 = vrot.slane %v2427, 4
        %v2430 = vrot.slane %v1831, 5
        %v2431 = vsel %vm791, %v2429, %v2430
        %v2432 = vunpack.c.l.b16 %v2379
        %v2433 = vunpack.c.l.b16 %v2382
        %v2434 = vunpack.c.l.b16 %v2386
        %v2435 = vunpack.c.l.b16 %v2389
        %v2436 = vunpack.c.l.b16 %v2393
        %v2437 = vunpack.c.l.b16 %v2396
        %v2438 = vunpack.c.l.b16 %v2400
        %v2439 = vunpack.c.l.b16 %v2403
        %v2440 = vunpack.c.l.b16 %v2407
        %v2441 = vunpack.c.l.b16 %v2410
        %v2442 = vunpack.c.l.b16 %v2414
        %v2443 = vunpack.c.l.b16 %v2417
        %v2444 = vunpack.c.l.b16 %v2421
        %v2445 = vunpack.c.l.b16 %v2424
        %v2446 = vunpack.c.l.b16 %v2428
        %v2447 = vunpack.c.l.b16 %v2431
        %v2448 = vpack.c.b16 %v2433, %v2432
        %v2449 = vpack.c.b16 %v2435, %v2434
        %v2450 = vpack.c.b16 %v2437, %v2436
        %v2451 = vpack.c.b16 %v2439, %v2438
        %v2452 = vpack.c.b16 %v2441, %v2440
        %v2453 = vpack.c.b16 %v2443, %v2442
        %v2454 = vpack.c.b16 %v2445, %v2444
        %v2455 = vpack.c.b16 %v2447, %v2446
        %v2457 = vsel %vm491, %v2448, 0
        %v2460 = vsel %vm491, %v2449, 0
        %v2463 = vsel %vm491, %v2450, 0
        %v2466 = vsel %vm491, %v2451, 0
        %v2469 = vsel %vm491, %v2452, 0
        %v2472 = vsel %vm491, %v2453, 0
        %v2475 = vsel %vm491, %v2454, 0
        %v2478 = vsel %vm491, %v2455, 0
        %v2481 = vsel %vm516, %v244, 0
        %2483 = vmatprep.subr.bf16.mxu0 0
        %2484 = vmatpush1.bf16.msra.mxu0 %v2481
        %2485 = vmatprep.subr.bf16.mxu0 0
        %2486 = vmatpush1.bf16.msra.mxu0 0
        %2487 = vmatprep.subr.bf16.mxu0 0
        %2488 = vmatpush1.bf16.msra.mxu0 0
        %2489 = vmatprep.subr.bf16.mxu0 0
        %2490 = vmatpush1.bf16.msra.mxu0 0
        %2491 = vmatprep.subr.bf16.mxu0 0
        %2492 = vmatpush1.bf16.msra.mxu0 0
        %2493 = vmatprep.subr.bf16.mxu0 0
        %2494 = vmatpush1.bf16.msra.mxu0 0
        %2495 = vmatprep.subr.bf16.mxu0 0
        %2496 = vmatpush1.bf16.msra.mxu0 0
        %2497 = vmatprep.subr.bf16.mxu0 0
        %2498 = vmatpush1.bf16.msra.mxu0 0
        %2499 = vmatprep.subr.bf16.mxu0 0
        %2500 = vmatpush1.bf16.msra.mxu0 0
        %2501 = vmatprep.subr.bf16.mxu0 0
        %2502 = vmatpush1.bf16.msra.mxu0 0
        %2503 = vmatprep.subr.bf16.mxu0 0
        %2504 = vmatpush1.bf16.msra.mxu0 0
        %2505 = vmatprep.subr.bf16.mxu0 0
        %2506 = vmatpush1.bf16.msra.mxu0 0
        %2507 = vmatprep.subr.bf16.mxu0 0
        %2508 = vmatpush1.bf16.msra.mxu0 0
        %2509 = vmatprep.subr.bf16.mxu0 0
        %2510 = vmatpush1.bf16.msra.mxu0 0
        %2511 = vmatprep.subr.bf16.mxu0 0
        %2512 = vmatpush1.bf16.msra.mxu0 0
        %2513 = vmatprep.subr.bf16.mxu0 0
        %2514 = vmatpush1.bf16.msra.mxu0 0
        %2515 = vmatprep.mubr.bf16.mxu0 0
        %2516 = vmatmul.mubr.bf16.gmra.mrb[0].mxu0 %v2457
        %v2517 = vpop.f32.mrb[0].mxu0
        %v2518 = vadd.f32 0.0, %v2517
        %v2519 = vpop.f32.mrb[0].mxu0
        %v2520 = vpop.f32.mrb[0].mxu0
        %v2521 = vadd.f32 0.0, %v2520
        %v2522 = vpop.f32.mrb[0].mxu0
        %2523 = vmatprep.mubr.bf16.mxu0 0
        %2524 = vmatmul.mubr.bf16.gmra.mrb[0].mxu0 %v2460
        %v2525 = vpop.f32.mrb[0].mxu0
        %v2526 = vadd.f32 0.0, %v2525
        %v2527 = vpop.f32.mrb[0].mxu0
        %v2528 = vpop.f32.mrb[0].mxu0
        %v2529 = vadd.f32 0.0, %v2528
        %v2530 = vpop.f32.mrb[0].mxu0
        %2531 = vmatprep.mubr.bf16.mxu0 0
        %2532 = vmatmul.mubr.bf16.gmra.mrb[0].mxu0 %v2463
        %v2533 = vpop.f32.mrb[0].mxu0
        %v2534 = vadd.f32 0.0, %v2533
        %v2535 = vpop.f32.mrb[0].mxu0
        %v2536 = vpop.f32.mrb[0].mxu0
        %v2537 = vadd.f32 0.0, %v2536
        %v2538 = vpop.f32.mrb[0].mxu0
        %2539 = vmatprep.mubr.bf16.mxu0 0
        %2540 = vmatmul.mubr.bf16.gmra.mrb[0].mxu0 %v2466
        %v2541 = vpop.f32.mrb[0].mxu0
        %v2542 = vadd.f32 0.0, %v2541
        %v2543 = vpop.f32.mrb[0].mxu0
        %v2544 = vpop.f32.mrb[0].mxu0
        %v2545 = vadd.f32 0.0, %v2544
        %v2546 = vpop.f32.mrb[0].mxu0
        %2547 = vmatprep.mubr.bf16.mxu0 0
        %2548 = vmatmul.mubr.bf16.gmra.mrb[0].mxu0 %v2469
        %v2549 = vpop.f32.mrb[0].mxu0
        %v2550 = vadd.f32 0.0, %v2549
        %v2551 = vpop.f32.mrb[0].mxu0
        %v2552 = vpop.f32.mrb[0].mxu0
        %v2553 = vadd.f32 0.0, %v2552
        %v2554 = vpop.f32.mrb[0].mxu0
        %2555 = vmatprep.mubr.bf16.mxu0 0
        %2556 = vmatmul.mubr.bf16.gmra.mrb[0].mxu0 %v2472
        %v2557 = vpop.f32.mrb[0].mxu0
        %v2558 = vadd.f32 0.0, %v2557
        %v2559 = vpop.f32.mrb[0].mxu0
        %v2560 = vpop.f32.mrb[0].mxu0
        %v2561 = vadd.f32 0.0, %v2560
        %v2562 = vpop.f32.mrb[0].mxu0
        %2563 = vmatprep.mubr.bf16.mxu0 0
        %2564 = vmatmul.mubr.bf16.gmra.mrb[0].mxu0 %v2475
        %v2565 = vpop.f32.mrb[0].mxu0
        %v2566 = vadd.f32 0.0, %v2565
        %v2567 = vpop.f32.mrb[0].mxu0
        %v2568 = vpop.f32.mrb[0].mxu0
        %v2569 = vadd.f32 0.0, %v2568
        %v2570 = vpop.f32.mrb[0].mxu0
        %2571 = vmatprep.mubr.bf16.mxu0 0
        %2572 = vmatmul.mubr.bf16.gmra.mrb[0].mxu0 %v2478
        %v2573 = vpop.f32.mrb[0].mxu0
        %v2574 = vadd.f32 0.0, %v2573
        %v2575 = vpop.f32.mrb[0].mxu0
        %v2576 = vpop.f32.mrb[0].mxu0
        %v2577 = vadd.f32 0.0, %v2576
        %v2578 = vpop.f32.mrb[0].mxu0
        %2579 = vdwg.mxu0
        %v2580 = vadd.f32 %v2352, %v2518
        %v2581 = vadd.f32 %v2353, %v2521
        %v2582 = vadd.f32 %v2354, %v2526
        %v2583 = vadd.f32 %v2355, %v2529
        %v2584 = vadd.f32 %v2356, %v2534
        %v2585 = vadd.f32 %v2357, %v2537
        %v2586 = vadd.f32 %v2358, %v2542
        %v2587 = vadd.f32 %v2359, %v2545
        %v2588 = vadd.f32 %v2360, %v2550
        %v2589 = vadd.f32 %v2361, %v2553
        %v2590 = vadd.f32 %v2362, %v2558
        %v2591 = vadd.f32 %v2363, %v2561
        %v2592 = vadd.f32 %v2364, %v2566
        %v2593 = vadd.f32 %v2365, %v2569
        %v2594 = vadd.f32 %v2366, %v2574
        %v2595 = vadd.f32 %v2367, %v2577
        %v2596 = vld [vmem:[%s2] sm:$0x1]
        %v2598 = vlaneseq
        %v2599 = vshrl.u32 %v2598, 7
        %v2600 = vsub.s32 0, %v2599
        %v2601 = vrot.slane %v2596, %v2600
        %v2603 = vadd.f32 %v2580, %v2601
        %v2604 = vadd.f32 %v2581, %v2601
        %v2605 = vadd.f32 %v2582, %v2601
        %v2606 = vadd.f32 %v2583, %v2601
        %v2607 = vadd.f32 %v2584, %v2601
        %v2608 = vadd.f32 %v2585, %v2601
        %v2609 = vadd.f32 %v2586, %v2601
        %v2610 = vadd.f32 %v2587, %v2601
        %v2611 = vadd.f32 %v2588, %v2601
        %v2612 = vadd.f32 %v2589, %v2601
        %v2613 = vadd.f32 %v2590, %v2601
        %v2614 = vadd.f32 %v2591, %v2601
        %v2615 = vadd.f32 %v2592, %v2601
        %v2616 = vadd.f32 %v2593, %v2601
        %v2617 = vadd.f32 %v2594, %v2601
        %v2618 = vadd.f32 %v2595, %v2601
        %v2619 = vmax.f32 %v2603, 0.0
        %v2620 = vmax.f32 %v2604, 0.0
        %v2621 = vmax.f32 %v2605, 0.0
        %v2622 = vmax.f32 %v2606, 0.0
        %v2623 = vmax.f32 %v2607, 0.0
        %v2624 = vmax.f32 %v2608, 0.0
        %v2625 = vmax.f32 %v2609, 0.0
        %v2626 = vmax.f32 %v2610, 0.0
        %v2627 = vmax.f32 %v2611, 0.0
        %v2628 = vmax.f32 %v2612, 0.0
        %v2629 = vmax.f32 %v2613, 0.0
        %v2630 = vmax.f32 %v2614, 0.0
        %v2631 = vmax.f32 %v2615, 0.0
        %v2632 = vmax.f32 %v2616, 0.0
        %v2633 = vmax.f32 %v2617, 0.0
        %v2634 = vmax.f32 %v2618, 0.0
        %vm2635 = vcmask 64512
        %2636 = vst.msk [vmem:[%s232] sm:$0xff] %vm2635, %v2619
        %2637 = vst.msk [vmem:[%s232 + $0x8] sm:$0xff] %vm2635, %v2620
        %2638 = vst.msk [vmem:[%s232 + $0x10] sm:$0xff] %vm2635, %v2621
        %2639 = vst.msk [vmem:[%s232 + $0x18] sm:$0xff] %vm2635, %v2622
        %2640 = vst.msk [vmem:[%s232 + $0x20] sm:$0xff] %vm2635, %v2623
        %2641 = vst.msk [vmem:[%s232 + $0x28] sm:$0xff] %vm2635, %v2624
        %2642 = vst.msk [vmem:[%s232 + $0x30] sm:$0xff] %vm2635, %v2625
        %2643 = vst.msk [vmem:[%s232 + $0x38] sm:$0xff] %vm2635, %v2626
        %2644 = vst.msk [vmem:[%s232 + $0x40] sm:$0xff] %vm2635, %v2627
        %2645 = vst.msk [vmem:[%s232 + $0x48] sm:$0xff] %vm2635, %v2628
        %2646 = vst.msk [vmem:[%s232 + $0x50] sm:$0xff] %vm2635, %v2629
        %2647 = vst.msk [vmem:[%s232 + $0x58] sm:$0xff] %vm2635, %v2630
        %2648 = vst.msk [vmem:[%s232 + $0x60] sm:$0xff] %vm2635, %v2631
        %2649 = vst.msk [vmem:[%s232 + $0x68] sm:$0xff] %vm2635, %v2632
        %2650 = vst.msk [vmem:[%s232 + $0x70] sm:$0xff] %vm2635, %v2633
        %2651 = vst.msk [vmem:[%s232 + $0x78] sm:$0xff] %vm2635, %v2634
        %p2652 = scmp.eq.s32.totalorder %s24, 0
        // Predicated region
        $region33: #{tpu_custom_call.1} parent=31 // pred_check
          %p2653 = pneg %p2652
        $region34: #{tpu_custom_call.1} parent=31 // pred_check_branch
          %2655 = sbr.rel (%p2653) target = $region36
        $region35: #{tpu_custom_call.1} parent=31 // pred_region
          %vm2656 = vcmask 58368
          %2657 = vst.msk [vmem:[%s217] sm:$0x3] %vm2656, 0.0
        $region36: #{tpu_custom_call.1} parent=31 // pred_fallthru
          _
        %v2658 = vsel %vm2635, %v2619, 0.0
        %v2659 = vsel %vm2635, %v2620, 0.0
        %v2660 = vadd.f32 %v2658, %v2659
        %v2661 = vsel %vm2635, %v2621, 0.0
        %v2662 = vadd.f32 %v2660, %v2661
        %v2663 = vsel %vm2635, %v2622, 0.0
        %v2664 = vadd.f32 %v2662, %v2663
        %v2665 = vsel %vm2635, %v2623, 0.0
        %v2666 = vadd.f32 %v2664, %v2665
        %v2667 = vsel %vm2635, %v2624, 0.0
        %v2668 = vadd.f32 %v2666, %v2667
        %v2669 = vsel %vm2635, %v2625, 0.0
        %v2670 = vadd.f32 %v2668, %v2669
        %v2671 = vsel %vm2635, %v2626, 0.0
        %v2672 = vadd.f32 %v2670, %v2671
        %v2673 = vsel %vm2635, %v2627, 0.0
        %v2674 = vadd.f32 %v2672, %v2673
        %v2675 = vsel %vm2635, %v2628, 0.0
        %v2676 = vadd.f32 %v2674, %v2675
        %v2677 = vsel %vm2635, %v2629, 0.0
        %v2678 = vadd.f32 %v2676, %v2677
        %v2679 = vsel %vm2635, %v2630, 0.0
        %v2680 = vadd.f32 %v2678, %v2679
        %v2681 = vsel %vm2635, %v2631, 0.0
        %v2682 = vadd.f32 %v2680, %v2681
        %v2683 = vsel %vm2635, %v2632, 0.0
        %v2684 = vadd.f32 %v2682, %v2683
        %v2685 = vsel %vm2635, %v2633, 0.0
        %v2686 = vadd.f32 %v2684, %v2685
        %v2687 = vsel %vm2635, %v2634, 0.0
        %v2688 = vadd.f32 %v2686, %v2687
        %v2689 = vrot.slane %v2688, 4
        %v2690 = vadd.f32 %v2688, %v2689
        %v2691 = vrot.slane %v2690, 2
        %v2692 = vadd.f32 %v2690, %v2691
        %v2693 = vrot.slane %v2692, 1
        %v2694 = vadd.f32 %v2692, %v2693
        %v2695 = vmul.f32 %v2619, %v2619
        %v2696 = vmul.f32 %v2620, %v2620
        %v2697 = vmul.f32 %v2621, %v2621
        %v2698 = vmul.f32 %v2622, %v2622
        %v2699 = vmul.f32 %v2623, %v2623
        %v2700 = vmul.f32 %v2624, %v2624
        %v2701 = vmul.f32 %v2625, %v2625
        %v2702 = vmul.f32 %v2626, %v2626
        %v2703 = vmul.f32 %v2627, %v2627
        %v2704 = vmul.f32 %v2628, %v2628
        %v2705 = vmul.f32 %v2629, %v2629
        %v2706 = vmul.f32 %v2630, %v2630
        %v2707 = vmul.f32 %v2631, %v2631
        %v2708 = vmul.f32 %v2632, %v2632
        %v2709 = vmul.f32 %v2633, %v2633
        %v2710 = vmul.f32 %v2634, %v2634
        %v2711 = vsel %vm2635, %v2695, 0.0
        %v2712 = vsel %vm2635, %v2696, 0.0
        %v2713 = vadd.f32 %v2711, %v2712
        %v2714 = vsel %vm2635, %v2697, 0.0
        %v2715 = vadd.f32 %v2713, %v2714
        %v2716 = vsel %vm2635, %v2698, 0.0
        %v2717 = vadd.f32 %v2715, %v2716
        %v2718 = vsel %vm2635, %v2699, 0.0
        %v2719 = vadd.f32 %v2717, %v2718
        %v2720 = vsel %vm2635, %v2700, 0.0
        %v2721 = vadd.f32 %v2719, %v2720
        %v2722 = vsel %vm2635, %v2701, 0.0
        %v2723 = vadd.f32 %v2721, %v2722
        %v2724 = vsel %vm2635, %v2702, 0.0
        %v2725 = vadd.f32 %v2723, %v2724
        %v2726 = vsel %vm2635, %v2703, 0.0
        %v2727 = vadd.f32 %v2725, %v2726
        %v2728 = vsel %vm2635, %v2704, 0.0
        %v2729 = vadd.f32 %v2727, %v2728
        %v2730 = vsel %vm2635, %v2705, 0.0
        %v2731 = vadd.f32 %v2729, %v2730
        %v2732 = vsel %vm2635, %v2706, 0.0
        %v2733 = vadd.f32 %v2731, %v2732
        %v2734 = vsel %vm2635, %v2707, 0.0
        %v2735 = vadd.f32 %v2733, %v2734
        %v2736 = vsel %vm2635, %v2708, 0.0
        %v2737 = vadd.f32 %v2735, %v2736
        %v2738 = vsel %vm2635, %v2709, 0.0
        %v2739 = vadd.f32 %v2737, %v2738
        %v2740 = vsel %vm2635, %v2710, 0.0
        %v2741 = vadd.f32 %v2739, %v2740
        %v2742 = vrot.slane %v2741, 4
        %v2743 = vadd.f32 %v2741, %v2742
        %v2744 = vrot.slane %v2743, 2
        %v2745 = vadd.f32 %v2743, %v2744
        %v2746 = vrot.slane %v2745, 1
        %v2747 = vadd.f32 %v2745, %v2746
        %v2748 = vld [vmem:[%s217] sm:$0x3]
        %vm2749 = vcmask 1040384
        %v2750 = vsel %vm2749, %v2694, %v2747
        %v2751 = vadd.f32 %v2748, %v2750
        %vm2752 = vcmask 58368
        %2753 = vst.msk [vmem:[%s217] sm:$0x3] %vm2752, %v2751
        %s2754 = smul.u32 8, %s24
        %p2755 = scmp.lt.s32.totalorder %s23, 1
        %s2756 = scalar_select %p2755, %s23, 1
        %p2757 = scmp.lt.s32.totalorder %s2754, 15
        %s2758 = scalar_select %p2757, %s2754, 15
        %s2759 = smul.addr %s2758, 2
        %s2760 = smul.addr %s2756, 32
        %s2761 = sadd.s32 %s2759, %s2760
        %s2762 = smul.addr %s2761, 8
        %s2763 = scalar_lea.vmem %s3, %s2762
        %s2764 = sand.u32 %s135, 1
        %s2765 = scalar_lea.sflag [#allocation3], %s2764
        %s2766 = sand.u32 %s135, 1
        %s2767 = smul.addr %s2766, 2
        %s2768 = scalar_lea.vmem [#allocation2], %s2767
        // Predicated region
        $region37: #{tpu_custom_call.1} parent=31 // pred_check
          %p2769 = pneg %p119
        $region38: #{tpu_custom_call.1} parent=31 // pred_check_branch
          %2771 = sbr.rel (%p2769) target = $region40
        $region39: #{tpu_custom_call.1} parent=31 // pred_region
          %s2772 = smul.u32 8, %s24
        $region40: #{tpu_custom_call.1} parent=31 // pred_fallthru
          _
        // Predicated region
        $region41: #{tpu_custom_call.1} parent=31 // pred_check
          %p2773 = pneg %p145
        $region42: #{tpu_custom_call.1} parent=31 // pred_check_branch
          %2775 = sbr.rel (%p2773) target = $region44
        $region43: #{tpu_custom_call.1} parent=31 // pred_region
          %s2777 = ssub.s32 32, 32
          %2778 = vsyncadd %s2765, %s2777
          %s2779 = smul.addr %s23, 32
          %s2780 = scalar_lea.hbm %s4, %s2779
          %s2782 = sshll.u32 %s2768, 4
          %s2783 = int_to_ptr.vmem [resolvable:$true] %s2782
          %2785 = dma.vmem_to_hbm [thread:$0]  %s2783, 32, %s2780, %s2765
        $region44: #{tpu_custom_call.1} parent=31 // pred_fallthru
          _
      $region32: #{tpu_custom_call.1} parent=5 // pred_fallthru
        _
      %p2786 = scmp.le.s32.totalorder 2, %s14
      // Predicated region
      $region45: #{tpu_custom_call.1} parent=5 // pred_check
        %p2787 = pneg %p2786
      $region46: #{tpu_custom_call.1} parent=5 // pred_check_branch
        %2789 = sbr.rel (%p2787) target = $region48
      $region47: #{tpu_custom_call.1} parent=5 // pred_region
        %s2790 = ssub.s32 %s14, 2
        // Predicated region
        $region49: #{tpu_custom_call.1} parent=47 // pred_check
          %p2791 = pneg %p125
        $region50: #{tpu_custom_call.1} parent=47 // pred_check_branch
          %2793 = sbr.rel (%p2791) target = $region52
        $region51: #{tpu_custom_call.1} parent=47 // pred_region
          %s2794 = smul.u32 8, %s26
          %p2795 = scmp.lt.s32.totalorder %s25, 1
          %s2796 = scalar_select %p2795, %s25, 1
          %p2797 = scmp.lt.s32.totalorder %s2794, 15
          %s2798 = scalar_select %p2797, %s2794, 15
          %s2799 = smul.addr %s2798, 2
          %s2800 = smul.addr %s2796, 32
          %s2801 = sadd.s32 %s2799, %s2800
          %s2802 = smul.addr %s2801, 8
          %s2803 = scalar_lea.vmem %s3, %s2802
        $region52: #{tpu_custom_call.1} parent=47 // pred_fallthru
          _
        // Predicated region
        $region53: #{tpu_custom_call.1} parent=47 // pred_check
          %p2804 = pneg %p151
        $region54: #{tpu_custom_call.1} parent=47 // pred_check_branch
          %2806 = sbr.rel (%p2804) target = $region56
        $region55: #{tpu_custom_call.1} parent=47 // pred_region
          %s2807 = sand.u32 %s136, 1
          %s2808 = scalar_lea.sflag [#allocation3], %s2807
          %s2809 = sand.u32 %s136, 1
          %s2810 = smul.addr %s2809, 2
          %s2811 = scalar_lea.vmem [#allocation2], %s2810
          %2812 = dma.done %s2808, 32
        $region56: #{tpu_custom_call.1} parent=47 // pred_fallthru
          _
      $region48: #{tpu_custom_call.1} parent=5 // pred_fallthru
        _
    $region6: #{tpu_custom_call.1} parent=1 // loop_footer
      %s18 = sadd.s32 1, %s14
    $region7: #{tpu_custom_call.1} parent=1 // loop_footer_branch
      %13 = sbr.rel target = $region3
    $region8: #{tpu_custom_call.1} parent=1 // loop_exit
      _
    %2813 = vsyncpa [#allocation3], 1
    %s2814 = scalar_lea.sflag [#allocation3], 1
    %2815 = vsyncpa %s2814, 1

</llo_original>
